<compile_context>
chip_gen: v6e
topology: v6e:2x2x1
jax: 0.10.0
libtpu: 0.0.40
codegen_flags: <defaults>
</compile_context>

<pallas_src>
import functools

import jax
import jax.numpy as jnp
from jax.experimental import pallas as pl
from jax.experimental.pallas import tpu as pltpu


def _round_up(x: int, m: int) -> int:
    return ((x + m - 1) // m) * m


def _leaky_relu(x, slope=0.2):
    return jnp.where(x > 0, x, slope * x)


def gan_disc_kernel(x_ref,
                    w1_ref, b1_ref,
                    w2_ref, b2_ref,
                    w3_ref, b3_ref,
                    w4_ref, b4_ref,
                    o_ref):
    # Block 1: Linear(im_dim -> 4h) + LeakyReLU(0.2)   (bf16 operands, f32 acc)
    h = jnp.dot(x_ref[...], w1_ref[...], preferred_element_type=jnp.float32)
    h = _leaky_relu(h + b1_ref[...])
    # Block 2: Linear(4h -> 2h) + LeakyReLU(0.2)
    h = jnp.dot(h.astype(jnp.bfloat16), w2_ref[...],
                preferred_element_type=jnp.float32)
    h = _leaky_relu(h + b2_ref[...])
    # Block 3: Linear(2h -> h) + LeakyReLU(0.2)
    h = jnp.dot(h.astype(jnp.bfloat16), w3_ref[...],
                preferred_element_type=jnp.float32)
    h = _leaky_relu(h + b3_ref[...])
    # Head: Linear(h -> 1) + Sigmoid  (reciprocal on the EUP path)
    logits = jnp.dot(h.astype(jnp.bfloat16), w4_ref[...],
                     preferred_element_type=jnp.float32) + b4_ref[...]
    o_ref[...] = pl.reciprocal(1.0 + jnp.exp(-logits), approx=True).astype(o_ref.dtype)


def gan_discriminator_forward(x, params, *, tile_n=512):
    """x: (N, im_dim) float32; params: dict of (w_i, b_i) with w_i in (in, out) f32."""
    n, im_dim = x.shape
    d1 = params["w1"].shape[1]
    d2 = params["w2"].shape[1]
    d3 = params["w3"].shape[1]
    d4 = params["w4"].shape[1]

    # Lane-dense K: pad im_dim up to a multiple of 128 (784 -> 896).
    k_pad = _round_up(im_dim, 128)
    # Batch tile: multiple of 8 (f32/bf16 sublanes), capped at tile_n.
    tn = min(tile_n, _round_up(max(n, 1), 8))
    n_pad = _round_up(max(n, 1), tn)
    grid = (n_pad // tn,)

    # bf16 MXU operands; zero-pad x columns / w1 rows so padding contributes 0.
    x_p = jnp.zeros((n_pad, k_pad), jnp.bfloat16)
    x_p = x_p.at[:n, :im_dim].set(x.astype(jnp.bfloat16))
    w1_p = jnp.zeros((k_pad, d1), jnp.bfloat16)
    w1_p = w1_p.at[:im_dim, :].set(params["w1"].astype(jnp.bfloat16))
    w2_p = params["w2"].astype(jnp.bfloat16)
    w3_p = params["w3"].astype(jnp.bfloat16)
    w4_p = params["w4"].astype(jnp.bfloat16)
    # Biases stay f32 (elementwise math is f32).
    b1, b2, b3, b4 = (params["b1"], params["b2"], params["b3"], params["b4"])

    const2d = lambda i: (0, 0)  # weights/biases: DMA once, resident in VMEM
    in_specs = [
        pl.BlockSpec((tn, k_pad), lambda i: (i, 0)),       # x: streamed batch tiles
        pl.BlockSpec((k_pad, d1), const2d), pl.BlockSpec((1, d1), const2d),
        pl.BlockSpec((d1, d2), const2d),    pl.BlockSpec((1, d2), const2d),
        pl.BlockSpec((d2, d3), const2d),    pl.BlockSpec((1, d3), const2d),
        pl.BlockSpec((d3, d4), const2d),    pl.BlockSpec((1, d4), const2d),
    ]
    out_specs = pl.BlockSpec((tn, 1), lambda i: (i, 0))

    flops = 2 * n_pad * (k_pad * d1 + d1 * d2 + d2 * d3 + d3 * d4)
    bytes_accessed = (n_pad * k_pad * 2                       # x (bf16)
                      + (k_pad * d1 + d1 * d2 + d2 * d3 + d3 * d4) * 2  # weights (bf16)
                      + (d1 + d2 + d3 + d4) * 4               # biases (f32)
                      + n_pad * 4)                            # output (f32)
    cost = pl.CostEstimate(flops=flops, transcendentals=n_pad,
                           bytes_accessed=bytes_accessed)

    out = pl.pallas_call(
        gan_disc_kernel,
        out_shape=jax.ShapeDtypeStruct((n_pad, 1), jnp.float32),
        grid=grid,
        in_specs=in_specs,
        out_specs=out_specs,
        compiler_params=pltpu.CompilerParams(
            dimension_semantics=("parallel",)),
        cost_estimate=cost,
    )(x_p, w1_p, b1, w2_p, b2, w3_p, b3, w4_p, b4)
    return out[:n]


def init_params(key, im_dim=784, hidden_dim=128):
    """Deterministic init matching the PyTorch module: weight ~ N(0, 0.02), bias = 0."""
    dims = [(im_dim, hidden_dim * 4),
            (hidden_dim * 4, hidden_dim * 2),
            (hidden_dim * 2, hidden_dim),
            (hidden_dim, 1)]
    params = {}
    keys = jax.random.split(key, len(dims))
    for i, ((d_in, d_out), k) in enumerate(zip(dims, keys), start=1):
        # PyTorch stores (out, in); generate that way, transpose to (in, out) for the kernel.
        w_pt = 0.02 * jax.random.normal(k, (d_out, d_in), dtype=jnp.float32)
        params[f"w{i}"] = jnp.transpose(w_pt)                 # (in, out)
        params[f"b{i}"] = jnp.zeros((1, d_out), jnp.float32)  # broadcast over batch
    return params


def reference_forward(x, params):
    h = x
    for i in range(1, 4):
        h = jnp.dot(h, params[f"w{i}"]) + params[f"b{i}"]
        h = jnp.where(h > 0, h, 0.2 * h)
    logits = jnp.dot(h, params["w4"]) + params["b4"]
    return jax.nn.sigmoid(logits)


if __name__ == "__main__":
    im_dim, hidden_dim, batch = 784, 128, 4

    key = jax.random.PRNGKey(0)
    k_params, k_x = jax.random.split(key)
    params = init_params(k_params, im_dim=im_dim, hidden_dim=hidden_dim)
    x = jax.random.normal(k_x, (batch, im_dim), dtype=jnp.float32)

    out = gan_discriminator_forward(x, params)
    out = jax.block_until_ready(out)

    ref = reference_forward(x, params)
    assert out.shape == (batch, 1), out.shape
    # bf16 MXU operands + approx reciprocal: relaxed tolerance vs. f32 reference.
    assert jnp.allclose(out, ref, atol=2e-2, rtol=2e-2), "mismatch vs. reference"

    print("KERNEL_OK")
</pallas_src>

<mosaic_0001>
module attributes {stable_mosaic.version = 11 : i64} {
  func.func @gan_disc_kernel(%arg0: i32, %arg1: memref<8x896xbf16, #tpu.memory_space<vmem>>, %arg2: memref<896x512xbf16, #tpu.memory_space<vmem>>, %arg3: memref<1x512xf32, #tpu.memory_space<vmem>>, %arg4: memref<512x256xbf16, #tpu.memory_space<vmem>>, %arg5: memref<1x256xf32, #tpu.memory_space<vmem>>, %arg6: memref<256x128xbf16, #tpu.memory_space<vmem>>, %arg7: memref<1x128xf32, #tpu.memory_space<vmem>>, %arg8: memref<128x1xbf16, #tpu.memory_space<vmem>>, %arg9: memref<1x1xf32, #tpu.memory_space<vmem>>, %arg10: memref<8x1xf32, #tpu.memory_space<vmem>>) attributes {dimension_semantics = [#tpu.dimension_semantics<parallel>], iteration_bounds = array<i64: 1>, scalar_prefetch = 0 : i64, scratch_operands = 0 : i64, tpu.core_type = #tpu.core_type<tc>, window_params = [{transform_indices = @transform_0, window_bounds = array<i64: 8, 896>}, {pipeline_mode = #tpu.pipeline_mode<synchronous>, transform_indices = @transform_1, window_bounds = array<i64: 896, 512>}, {pipeline_mode = #tpu.pipeline_mode<synchronous>, transform_indices = @transform_2, window_bounds = array<i64: 1, 512>}, {pipeline_mode = #tpu.pipeline_mode<synchronous>, transform_indices = @transform_3, window_bounds = array<i64: 512, 256>}, {pipeline_mode = #tpu.pipeline_mode<synchronous>, transform_indices = @transform_4, window_bounds = array<i64: 1, 256>}, {pipeline_mode = #tpu.pipeline_mode<synchronous>, transform_indices = @transform_5, window_bounds = array<i64: 256, 128>}, {pipeline_mode = #tpu.pipeline_mode<synchronous>, transform_indices = @transform_6, window_bounds = array<i64: 1, 128>}, {pipeline_mode = #tpu.pipeline_mode<synchronous>, transform_indices = @transform_7, window_bounds = array<i64: 128, 1>}, {pipeline_mode = #tpu.pipeline_mode<synchronous>, transform_indices = @transform_8, window_bounds = array<i64: 1, 1>}, {transform_indices = @transform_9, window_bounds = array<i64: 8, 1>}]} {
    %c0 = arith.constant 0 : index
    %c0_0 = arith.constant 0 : index
    %0 = vector.load %arg1[%c0, %c0_0] : memref<8x896xbf16, #tpu.memory_space<vmem>>, vector<8x896xbf16>
    %c0_1 = arith.constant 0 : index
    %c0_2 = arith.constant 0 : index
    %1 = vector.load %arg2[%c0_1, %c0_2] : memref<896x512xbf16, #tpu.memory_space<vmem>>, vector<896x512xbf16>
    %cst = arith.constant dense<0.000000e+00> : vector<8x512xf32>
    %2 = tpu.matmul %0, %1, %cst {dimension_numbers = #tpu.dot_dimension_numbers<[1], [0], [0], [1], [0, 0, 1, 1], [], []>} : vector<8x896xbf16>, vector<896x512xbf16>, vector<8x512xf32> -> vector<8x512xf32>
    %c0_3 = arith.constant 0 : index
    %c0_4 = arith.constant 0 : index
    %3 = vector.load %arg3[%c0_3, %c0_4] : memref<1x512xf32, #tpu.memory_space<vmem>>, vector<1x512xf32>
    %4 = vector.broadcast %3 : vector<1x512xf32> to vector<8x512xf32>
    %5 = arith.addf %2, %4 : vector<8x512xf32>
    %cst_5 = arith.constant 0.000000e+00 : f32
    %6 = vector.broadcast %cst_5 : f32 to vector<8x512xf32>
    %7 = arith.cmpf ogt, %5, %6 : vector<8x512xf32>
    %cst_6 = arith.constant 2.000000e-01 : f32
    %8 = vector.broadcast %cst_6 : f32 to vector<8x512xf32>
    %9 = arith.mulf %8, %5 : vector<8x512xf32>
    %10 = arith.select %7, %5, %9 : vector<8x512xi1>, vector<8x512xf32>
    %11 = arith.truncf %10 : vector<8x512xf32> to vector<8x512xbf16>
    %c0_7 = arith.constant 0 : index
    %c0_8 = arith.constant 0 : index
    %12 = vector.load %arg4[%c0_7, %c0_8] : memref<512x256xbf16, #tpu.memory_space<vmem>>, vector<512x256xbf16>
    %cst_9 = arith.constant dense<0.000000e+00> : vector<8x256xf32>
    %13 = tpu.matmul %11, %12, %cst_9 {dimension_numbers = #tpu.dot_dimension_numbers<[1], [0], [0], [1], [0, 0, 1, 1], [], []>} : vector<8x512xbf16>, vector<512x256xbf16>, vector<8x256xf32> -> vector<8x256xf32>
    %c0_10 = arith.constant 0 : index
    %c0_11 = arith.constant 0 : index
    %14 = vector.load %arg5[%c0_10, %c0_11] : memref<1x256xf32, #tpu.memory_space<vmem>>, vector<1x256xf32>
    %15 = vector.broadcast %14 : vector<1x256xf32> to vector<8x256xf32>
    %16 = arith.addf %13, %15 : vector<8x256xf32>
    %cst_12 = arith.constant 0.000000e+00 : f32
    %17 = vector.broadcast %cst_12 : f32 to vector<8x256xf32>
    %18 = arith.cmpf ogt, %16, %17 : vector<8x256xf32>
    %cst_13 = arith.constant 2.000000e-01 : f32
    %19 = vector.broadcast %cst_13 : f32 to vector<8x256xf32>
    %20 = arith.mulf %19, %16 : vector<8x256xf32>
    %21 = arith.select %18, %16, %20 : vector<8x256xi1>, vector<8x256xf32>
    %22 = arith.truncf %21 : vector<8x256xf32> to vector<8x256xbf16>
    %c0_14 = arith.constant 0 : index
    %c0_15 = arith.constant 0 : index
    %23 = vector.load %arg6[%c0_14, %c0_15] : memref<256x128xbf16, #tpu.memory_space<vmem>>, vector<256x128xbf16>
    %cst_16 = arith.constant dense<0.000000e+00> : vector<8x128xf32>
    %24 = tpu.matmul %22, %23, %cst_16 {dimension_numbers = #tpu.dot_dimension_numbers<[1], [0], [0], [1], [0, 0, 1, 1], [], []>} : vector<8x256xbf16>, vector<256x128xbf16>, vector<8x128xf32> -> vector<8x128xf32>
    %c0_17 = arith.constant 0 : index
    %c0_18 = arith.constant 0 : index
    %25 = vector.load %arg7[%c0_17, %c0_18] : memref<1x128xf32, #tpu.memory_space<vmem>>, vector<1x128xf32>
    %26 = vector.broadcast %25 : vector<1x128xf32> to vector<8x128xf32>
    %27 = arith.addf %24, %26 : vector<8x128xf32>
    %cst_19 = arith.constant 0.000000e+00 : f32
    %28 = vector.broadcast %cst_19 : f32 to vector<8x128xf32>
    %29 = arith.cmpf ogt, %27, %28 : vector<8x128xf32>
    %cst_20 = arith.constant 2.000000e-01 : f32
    %30 = vector.broadcast %cst_20 : f32 to vector<8x128xf32>
    %31 = arith.mulf %30, %27 : vector<8x128xf32>
    %32 = arith.select %29, %27, %31 : vector<8x128xi1>, vector<8x128xf32>
    %33 = arith.truncf %32 : vector<8x128xf32> to vector<8x128xbf16>
    %c0_21 = arith.constant 0 : index
    %c0_22 = arith.constant 0 : index
    %34 = vector.load %arg8[%c0_21, %c0_22] : memref<128x1xbf16, #tpu.memory_space<vmem>>, vector<128x1xbf16>
    %cst_23 = arith.constant dense<0.000000e+00> : vector<8x1xf32>
    %35 = tpu.matmul %33, %34, %cst_23 {dimension_numbers = #tpu.dot_dimension_numbers<[1], [0], [0], [1], [0, 0, 1, 1], [], []>} : vector<8x128xbf16>, vector<128x1xbf16>, vector<8x1xf32> -> vector<8x1xf32>
    %c0_24 = arith.constant 0 : index
    %c0_25 = arith.constant 0 : index
    %36 = vector.load %arg9[%c0_24, %c0_25] : memref<1x1xf32, #tpu.memory_space<vmem>>, vector<1x1xf32>
    %37 = vector.broadcast %36 : vector<1x1xf32> to vector<8x1xf32>
    %38 = arith.addf %35, %37 : vector<8x1xf32>
    %cst_26 = arith.constant 0.000000e+00 : f32
    %39 = vector.broadcast %cst_26 : f32 to vector<8x1xf32>
    %40 = arith.subf %39, %38 : vector<8x1xf32>
    %41 = math.exp %40 : vector<8x1xf32>
    %cst_27 = arith.constant 1.000000e+00 : f32
    %42 = vector.broadcast %cst_27 : f32 to vector<8x1xf32>
    %43 = arith.addf %42, %41 : vector<8x1xf32>
    %44 = tpu.reciprocal %43 {approx = true} : vector<8x1xf32> -> vector<8x1xf32>
    %c0_28 = arith.constant 0 : index
    %c0_29 = arith.constant 0 : index
    %45 = vector.load %arg10[%c0_28, %c0_29] : memref<8x1xf32, #tpu.memory_space<vmem>>, vector<8x1xf32>
    tpu.vector_store %arg10[%c0_28, %c0_29], %44 {strides = array<i32>} : memref<8x1xf32, #tpu.memory_space<vmem>>, vector<8x1xf32>,
    return
  }
  func.func @transform_0(%arg0: i32) -> (i32, i32) {
    %c0_i32 = arith.constant 0 : i32
    %c0_i32_0 = arith.constant 0 : i32
    return %arg0, %c0_i32 : i32, i32
  }
  func.func @transform_1(%arg0: i32) -> (i32, i32) {
    %c0_i32 = arith.constant 0 : i32
    %c0_i32_0 = arith.constant 0 : i32
    %c0_i32_1 = arith.constant 0 : i32
    return %c0_i32, %c0_i32_0 : i32, i32
  }
  func.func @transform_2(%arg0: i32) -> (i32, i32) {
    %c0_i32 = arith.constant 0 : i32
    %c0_i32_0 = arith.constant 0 : i32
    %c0_i32_1 = arith.constant 0 : i32
    return %c0_i32, %c0_i32_0 : i32, i32
  }
  func.func @transform_3(%arg0: i32) -> (i32, i32) {
    %c0_i32 = arith.constant 0 : i32
    %c0_i32_0 = arith.constant 0 : i32
    %c0_i32_1 = arith.constant 0 : i32
    return %c0_i32, %c0_i32_0 : i32, i32
  }
  func.func @transform_4(%arg0: i32) -> (i32, i32) {
    %c0_i32 = arith.constant 0 : i32
    %c0_i32_0 = arith.constant 0 : i32
    %c0_i32_1 = arith.constant 0 : i32
    return %c0_i32, %c0_i32_0 : i32, i32
  }
  func.func @transform_5(%arg0: i32) -> (i32, i32) {
    %c0_i32 = arith.constant 0 : i32
    %c0_i32_0 = arith.constant 0 : i32
    %c0_i32_1 = arith.constant 0 : i32
    return %c0_i32, %c0_i32_0 : i32, i32
  }
  func.func @transform_6(%arg0: i32) -> (i32, i32) {
    %c0_i32 = arith.constant 0 : i32
    %c0_i32_0 = arith.constant 0 : i32
    %c0_i32_1 = arith.constant 0 : i32
    return %c0_i32, %c0_i32_0 : i32, i32
  }
  func.func @transform_7(%arg0: i32) -> (i32, i32) {
    %c0_i32 = arith.constant 0 : i32
    %c0_i32_0 = arith.constant 0 : i32
    %c0_i32_1 = arith.constant 0 : i32
    return %c0_i32, %c0_i32_0 : i32, i32
  }
  func.func @transform_8(%arg0: i32) -> (i32, i32) {
    %c0_i32 = arith.constant 0 : i32
    %c0_i32_0 = arith.constant 0 : i32
    %c0_i32_1 = arith.constant 0 : i32
    return %c0_i32, %c0_i32_0 : i32, i32
  }
  func.func @transform_9(%arg0: i32) -> (i32, i32) {
    %c0_i32 = arith.constant 0 : i32
    %c0_i32_0 = arith.constant 0 : i32
    return %arg0, %c0_i32 : i32, i32
  }
}

</mosaic_0001>

<llo_original>
// kernel: tpu_custom_call.1
$region0: #{tpu_custom_call.1}
  #allocation0 [shape = 'u32[]', space=smem, size = 0x4, offset = 0x4, fixed_abs, tag = 'smem constant byte address 0x4 - core index']
  #allocation1 [shape = 'u32[144,128]{1,0:T(1,128)}', space=vmem, size = 0x12000, scoped, tag = 'internal scratch']
  #allocation2 [shape = 'f32[1,1]{1,0:T(1,128)S(1)}', space=vmem, size = 0x200, scoped, tag = 'scoped memory for tpu_custom_call.1']
  %s0 = inlined_call_operand.vmem [shape: bf16[8,896], index: 0, kind: input, shape index: {}]
  %s1 = inlined_call_operand.hbm [shape: bf16[896,512], index: 1, kind: input, shape index: {}]
  %s2 = inlined_call_operand.vmem [shape: f32[1,512], index: 2, kind: input, shape index: {}]
  %s3 = inlined_call_operand.hbm [shape: bf16[512,256], index: 3, kind: input, shape index: {}]
  %s4 = inlined_call_operand.vmem [shape: f32[1,256], index: 4, kind: input, shape index: {}]
  %s5 = inlined_call_operand.hbm [shape: bf16[256,128], index: 5, kind: input, shape index: {}]
  %s6 = inlined_call_operand.vmem [shape: f32[1,128], index: 6, kind: input, shape index: {}]
  %s7 = inlined_call_operand.vmem [shape: bf16[128,1], index: 7, kind: input, shape index: {}]
  %s8 = inlined_call_operand.<no memory space> [shape: f32[1,1], index: 8, kind: input, shape index: {}]
  %s9 = inlined_call_operand.vmem [shape: f32[8,1], index: 9, kind: output, shape index: {}]
  %s10 = sld [smem:[#allocation0]]
  $region58: #{tpu_custom_call.1} parent=0
    _
  %s12 = ssub.s32 1, %s10
  %s13 = scalar_select 0, %s12, %s10
  %v14 = vstv %s8
  %15 = vst [vmem:[#allocation2] sm:$0x1] %v14
  $region1: #{tpu_custom_call.1} parent=0
    #allocation3 [shape = 'u8[917504]{0}', space=vmem, size = 0xe0000, scoped, tag = 'input window, operand 1, single buffered']
    #allocation4 [shape = 's32[1]{0}', space=sflag, size = 0x4, scoped, tag = 'scoped memory for tpu_custom_call.1']
    #allocation5 [shape = 'u8[262144]{0}', space=vmem, size = 0x40000, scoped, tag = 'input window, operand 3, single buffered']
    #allocation6 [shape = 's32[1]{0}', space=sflag, size = 0x4, scoped, tag = 'scoped memory for tpu_custom_call.1']
    #allocation7 [shape = 'u8[65536]{0}', space=vmem, size = 0x10000, scoped, tag = 'input window, operand 5, single buffered']
    %16 = vsyncpa [#allocation4], 0
    %17 = vsyncpa [#allocation6], 0
    // Predicated region
    $region2: #{tpu_custom_call.1} parent=1 // pred_check
      _
    $region3: #{tpu_custom_call.1} parent=1 // pred_check_branch
      %19 = sbr.rel (0) target = $region5
    $region4: #{tpu_custom_call.1} parent=1 // pred_region
      _
    $region5: #{tpu_custom_call.1} parent=1 // pred_fallthru
      _
    // Predicated region
    $region6: #{tpu_custom_call.1} parent=1 // pred_check
      _
    $region7: #{tpu_custom_call.1} parent=1 // pred_check_branch
      %21 = sbr.rel (0) target = $region9
    $region8: #{tpu_custom_call.1} parent=1 // pred_region
      %s23 = ssub.s32 28672, 28672
      %24 = vsyncadd [#allocation4], %s23
      %s25 = sshll.u32 [#allocation3], 4
      %s26 = int_to_ptr.vmem [resolvable:$true] %s25
      %31 = dma.hbm_to_vmem [thread:$0]  %s1, 28672, %s26, [#allocation4], 256, 256, 16
    $region9: #{tpu_custom_call.1} parent=1 // pred_fallthru
      _
    // Predicated region
    $region10: #{tpu_custom_call.1} parent=1 // pred_check
      _
    $region11: #{tpu_custom_call.1} parent=1 // pred_check_branch
      %33 = sbr.rel (0) target = $region13
    $region12: #{tpu_custom_call.1} parent=1 // pred_region
      _
    $region13: #{tpu_custom_call.1} parent=1 // pred_fallthru
      _
    // Predicated region
    $region14: #{tpu_custom_call.1} parent=1 // pred_check
      _
    $region15: #{tpu_custom_call.1} parent=1 // pred_check_branch
      %35 = sbr.rel (0) target = $region17
    $region16: #{tpu_custom_call.1} parent=1 // pred_region
      %s37 = ssub.s32 8192, 8192
      %38 = vsyncadd [#allocation6], %s37
      %s39 = sshll.u32 [#allocation5], 4
      %s40 = int_to_ptr.vmem [resolvable:$true] %s39
      %45 = dma.hbm_to_vmem [thread:$0]  %s3, 8192, %s40, [#allocation6], 128, 128, 8
    $region17: #{tpu_custom_call.1} parent=1 // pred_fallthru
      _
    // Predicated region
    $region18: #{tpu_custom_call.1} parent=1 // pred_check
      _
    $region19: #{tpu_custom_call.1} parent=1 // pred_check_branch
      %47 = sbr.rel (0) target = $region21
    $region20: #{tpu_custom_call.1} parent=1 // pred_region
      _
    $region21: #{tpu_custom_call.1} parent=1 // pred_fallthru
      _
    // Predicated region
    $region22: #{tpu_custom_call.1} parent=1 // pred_check
      _
    $region23: #{tpu_custom_call.1} parent=1 // pred_check_branch
      %49 = sbr.rel (0) target = $region25
    $region24: #{tpu_custom_call.1} parent=1 // pred_region
      %s51 = ssub.s32 2048, 2048
      %52 = vsyncadd [#allocation6], %s51
      %s53 = sshll.u32 [#allocation7], 4
      %s54 = int_to_ptr.vmem [resolvable:$true] %s53
      %59 = dma.hbm_to_vmem [thread:$0]  %s5, 2048, %s54, [#allocation6], 64, 64, 4
    $region25: #{tpu_custom_call.1} parent=1 // pred_fallthru
      _
    // Predicated region
    $region26: #{tpu_custom_call.1} parent=1 // pred_check
      _
    $region27: #{tpu_custom_call.1} parent=1 // pred_check_branch
      %61 = sbr.rel (0) target = $region29
    $region28: #{tpu_custom_call.1} parent=1 // pred_region
      _
    $region29: #{tpu_custom_call.1} parent=1 // pred_fallthru
      _
    // Predicated region
    $region30: #{tpu_custom_call.1} parent=1 // pred_check
      _
    $region31: #{tpu_custom_call.1} parent=1 // pred_check_branch
      %63 = sbr.rel (0) target = $region33
    $region32: #{tpu_custom_call.1} parent=1 // pred_region
      _
    $region33: #{tpu_custom_call.1} parent=1 // pred_fallthru
      _
    // Predicated region
    $region34: #{tpu_custom_call.1} parent=1 // pred_check
      _
    $region35: #{tpu_custom_call.1} parent=1 // pred_check_branch
      %65 = sbr.rel (0) target = $region37
    $region36: #{tpu_custom_call.1} parent=1 // pred_region
      _
    $region37: #{tpu_custom_call.1} parent=1 // pred_fallthru
      _
    // Predicated region
    $region38: #{tpu_custom_call.1} parent=1 // pred_check
      _
    $region39: #{tpu_custom_call.1} parent=1 // pred_check_branch
      %67 = sbr.rel (0) target = $region41
    $region40: #{tpu_custom_call.1} parent=1 // pred_region
      %68 = dma.done [#allocation4], 28672
    $region41: #{tpu_custom_call.1} parent=1 // pred_fallthru
      _
    // Predicated region
    $region42: #{tpu_custom_call.1} parent=1 // pred_check
      _
    $region43: #{tpu_custom_call.1} parent=1 // pred_check_branch
      %70 = sbr.rel (0) target = $region45
    $region44: #{tpu_custom_call.1} parent=1 // pred_region
      %71 = dma.done [#allocation6], 8192
    $region45: #{tpu_custom_call.1} parent=1 // pred_fallthru
      _
    // Predicated region
    $region46: #{tpu_custom_call.1} parent=1 // pred_check
      _
    $region47: #{tpu_custom_call.1} parent=1 // pred_check_branch
      %73 = sbr.rel (0) target = $region49
    $region48: #{tpu_custom_call.1} parent=1 // pred_region
      %74 = dma.done [#allocation6], 2048
    $region49: #{tpu_custom_call.1} parent=1 // pred_fallthru
      _
    %v76 = vld [vmem:[%s0] sm:$0xff]
    %v77 = vld [vmem:[%s0 + $0x8] sm:$0xff]
    %v78 = vld [vmem:[%s0 + $0x10] sm:$0xff]
    %v79 = vld [vmem:[%s0 + $0x18] sm:$0xf]
    %v80 = vld [vmem:[#allocation3] sm:$0xff]
    %v81 = vld [vmem:[#allocation3 + $0x8] sm:$0xff]
    %v82 = vld [vmem:[#allocation3 + $0x10] sm:$0xff]
    %v83 = vld [vmem:[#allocation3 + $0x18] sm:$0xff]
    %v84 = vld [vmem:[#allocation3 + $0x20] sm:$0xff]
    %v85 = vld [vmem:[#allocation3 + $0x28] sm:$0xff]
    %v86 = vld [vmem:[#allocation3 + $0x30] sm:$0xff]
    %v87 = vld [vmem:[#allocation3 + $0x38] sm:$0xff]
    %v88 = vld [vmem:[#allocation3 + $0x40] sm:$0xff]
    %v89 = vld [vmem:[#allocation3 + $0x48] sm:$0xff]
    %v90 = vld [vmem:[#allocation3 + $0x50] sm:$0xff]
    %v91 = vld [vmem:[#allocation3 + $0x58] sm:$0xff]
    %v92 = vld [vmem:[#allocation3 + $0x60] sm:$0xff]
    %v93 = vld [vmem:[#allocation3 + $0x68] sm:$0xff]
    %v94 = vld [vmem:[#allocation3 + $0x70] sm:$0xff]
    %v95 = vld [vmem:[#allocation3 + $0x78] sm:$0xff]
    %v96 = vld [vmem:[#allocation3 + $0x80] sm:$0xff]
    %v97 = vld [vmem:[#allocation3 + $0x88] sm:$0xff]
    %v98 = vld [vmem:[#allocation3 + $0x90] sm:$0xff]
    %v99 = vld [vmem:[#allocation3 + $0x98] sm:$0xff]
    %v100 = vld [vmem:[#allocation3 + $0xa0] sm:$0xff]
    %v101 = vld [vmem:[#allocation3 + $0xa8] sm:$0xff]
    %v102 = vld [vmem:[#allocation3 + $0xb0] sm:$0xff]
    %v103 = vld [vmem:[#allocation3 + $0xb8] sm:$0xff]
    %v104 = vld [vmem:[#allocation3 + $0xc0] sm:$0xff]
    %v105 = vld [vmem:[#allocation3 + $0xc8] sm:$0xff]
    %v106 = vld [vmem:[#allocation3 + $0xd0] sm:$0xff]
    %v107 = vld [vmem:[#allocation3 + $0xd8] sm:$0xff]
    %v108 = vld [vmem:[#allocation3 + $0xe0] sm:$0xff]
    %v109 = vld [vmem:[#allocation3 + $0xe8] sm:$0xff]
    %v110 = vld [vmem:[#allocation3 + $0xf0] sm:$0xff]
    %v111 = vld [vmem:[#allocation3 + $0xf8] sm:$0xff]
    %v112 = vld [vmem:[#allocation3 + $0x100] sm:$0xff]
    %v113 = vld [vmem:[#allocation3 + $0x108] sm:$0xff]
    %v114 = vld [vmem:[#allocation3 + $0x110] sm:$0xff]
    %v115 = vld [vmem:[#allocation3 + $0x118] sm:$0xff]
    %v116 = vld [vmem:[#allocation3 + $0x120] sm:$0xff]
    %v117 = vld [vmem:[#allocation3 + $0x128] sm:$0xff]
    %v118 = vld [vmem:[#allocation3 + $0x130] sm:$0xff]
    %v119 = vld [vmem:[#allocation3 + $0x138] sm:$0xff]
    %v120 = vld [vmem:[#allocation3 + $0x140] sm:$0xff]
    %v121 = vld [vmem:[#allocation3 + $0x148] sm:$0xff]
    %v122 = vld [vmem:[#allocation3 + $0x150] sm:$0xff]
    %v123 = vld [vmem:[#allocation3 + $0x158] sm:$0xff]
    %v124 = vld [vmem:[#allocation3 + $0x160] sm:$0xff]
    %v125 = vld [vmem:[#allocation3 + $0x168] sm:$0xff]
    %v126 = vld [vmem:[#allocation3 + $0x170] sm:$0xff]
    %v127 = vld [vmem:[#allocation3 + $0x178] sm:$0xff]
    %v128 = vld [vmem:[#allocation3 + $0x180] sm:$0xff]
    %v129 = vld [vmem:[#allocation3 + $0x188] sm:$0xff]
    %v130 = vld [vmem:[#allocation3 + $0x190] sm:$0xff]
    %v131 = vld [vmem:[#allocation3 + $0x198] sm:$0xff]
    %v132 = vld [vmem:[#allocation3 + $0x1a0] sm:$0xff]
    %v133 = vld [vmem:[#allocation3 + $0x1a8] sm:$0xff]
    %v134 = vld [vmem:[#allocation3 + $0x1b0] sm:$0xff]
    %v135 = vld [vmem:[#allocation3 + $0x1b8] sm:$0xff]
    %v136 = vld [vmem:[#allocation3 + $0x1c0] sm:$0xff]
    %v137 = vld [vmem:[#allocation3 + $0x1c8] sm:$0xff]
    %v138 = vld [vmem:[#allocation3 + $0x1d0] sm:$0xff]
    %v139 = vld [vmem:[#allocation3 + $0x1d8] sm:$0xff]
    %v140 = vld [vmem:[#allocation3 + $0x1e0] sm:$0xff]
    %v141 = vld [vmem:[#allocation3 + $0x1e8] sm:$0xff]
    %v142 = vld [vmem:[#allocation3 + $0x1f0] sm:$0xff]
    %v143 = vld [vmem:[#allocation3 + $0x1f8] sm:$0xff]
    %v144 = vld [vmem:[#allocation3 + $0x200] sm:$0xff]
    %v145 = vld [vmem:[#allocation3 + $0x208] sm:$0xff]
    %v146 = vld [vmem:[#allocation3 + $0x210] sm:$0xff]
    %v147 = vld [vmem:[#allocation3 + $0x218] sm:$0xff]
    %v148 = vld [vmem:[#allocation3 + $0x220] sm:$0xff]
    %v149 = vld [vmem:[#allocation3 + $0x228] sm:$0xff]
    %v150 = vld [vmem:[#allocation3 + $0x230] sm:$0xff]
    %v151 = vld [vmem:[#allocation3 + $0x238] sm:$0xff]
    %v152 = vld [vmem:[#allocation3 + $0x240] sm:$0xff]
    %v153 = vld [vmem:[#allocation3 + $0x248] sm:$0xff]
    %v154 = vld [vmem:[#allocation3 + $0x250] sm:$0xff]
    %v155 = vld [vmem:[#allocation3 + $0x258] sm:$0xff]
    %v156 = vld [vmem:[#allocation3 + $0x260] sm:$0xff]
    %v157 = vld [vmem:[#allocation3 + $0x268] sm:$0xff]
    %v158 = vld [vmem:[#allocation3 + $0x270] sm:$0xff]
    %v159 = vld [vmem:[#allocation3 + $0x278] sm:$0xff]
    %v160 = vld [vmem:[#allocation3 + $0x280] sm:$0xff]
    %v161 = vld [vmem:[#allocation3 + $0x288] sm:$0xff]
    %v162 = vld [vmem:[#allocation3 + $0x290] sm:$0xff]
    %v163 = vld [vmem:[#allocation3 + $0x298] sm:$0xff]
    %v164 = vld [vmem:[#allocation3 + $0x2a0] sm:$0xff]
    %v165 = vld [vmem:[#allocation3 + $0x2a8] sm:$0xff]
    %v166 = vld [vmem:[#allocation3 + $0x2b0] sm:$0xff]
    %v167 = vld [vmem:[#allocation3 + $0x2b8] sm:$0xff]
    %v168 = vld [vmem:[#allocation3 + $0x2c0] sm:$0xff]
    %v169 = vld [vmem:[#allocation3 + $0x2c8] sm:$0xff]
    %v170 = vld [vmem:[#allocation3 + $0x2d0] sm:$0xff]
    %v171 = vld [vmem:[#allocation3 + $0x2d8] sm:$0xff]
    %v172 = vld [vmem:[#allocation3 + $0x2e0] sm:$0xff]
    %v173 = vld [vmem:[#allocation3 + $0x2e8] sm:$0xff]
    %v174 = vld [vmem:[#allocation3 + $0x2f0] sm:$0xff]
    %v175 = vld [vmem:[#allocation3 + $0x2f8] sm:$0xff]
    %v176 = vld [vmem:[#allocation3 + $0x300] sm:$0xff]
    %v177 = vld [vmem:[#allocation3 + $0x308] sm:$0xff]
    %v178 = vld [vmem:[#allocation3 + $0x310] sm:$0xff]
    %v179 = vld [vmem:[#allocation3 + $0x318] sm:$0xff]
    %v180 = vld [vmem:[#allocation3 + $0x320] sm:$0xff]
    %v181 = vld [vmem:[#allocation3 + $0x328] sm:$0xff]
    %v182 = vld [vmem:[#allocation3 + $0x330] sm:$0xff]
    %v183 = vld [vmem:[#allocation3 + $0x338] sm:$0xff]
    %v184 = vld [vmem:[#allocation3 + $0x340] sm:$0xff]
    %v185 = vld [vmem:[#allocation3 + $0x348] sm:$0xff]
    %v186 = vld [vmem:[#allocation3 + $0x350] sm:$0xff]
    %v187 = vld [vmem:[#allocation3 + $0x358] sm:$0xff]
    %v188 = vld [vmem:[#allocation3 + $0x360] sm:$0xff]
    %v189 = vld [vmem:[#allocation3 + $0x368] sm:$0xff]
    %v190 = vld [vmem:[#allocation3 + $0x370] sm:$0xff]
    %v191 = vld [vmem:[#allocation3 + $0x378] sm:$0xff]
    %v192 = vld [vmem:[#allocation3 + $0x380] sm:$0xff]
    %v193 = vld [vmem:[#allocation3 + $0x388] sm:$0xff]
    %v194 = vld [vmem:[#allocation3 + $0x390] sm:$0xff]
    %v195 = vld [vmem:[#allocation3 + $0x398] sm:$0xff]
    %v196 = vld [vmem:[#allocation3 + $0x3a0] sm:$0xff]
    %v197 = vld [vmem:[#allocation3 + $0x3a8] sm:$0xff]
    %v198 = vld [vmem:[#allocation3 + $0x3b0] sm:$0xff]
    %v199 = vld [vmem:[#allocation3 + $0x3b8] sm:$0xff]
    %v200 = vld [vmem:[#allocation3 + $0x3c0] sm:$0xff]
    %v201 = vld [vmem:[#allocation3 + $0x3c8] sm:$0xff]
    %v202 = vld [vmem:[#allocation3 + $0x3d0] sm:$0xff]
    %v203 = vld [vmem:[#allocation3 + $0x3d8] sm:$0xff]
    %v204 = vld [vmem:[#allocation3 + $0x3e0] sm:$0xff]
    %v205 = vld [vmem:[#allocation3 + $0x3e8] sm:$0xff]
    %v206 = vld [vmem:[#allocation3 + $0x3f0] sm:$0xff]
    %v207 = vld [vmem:[#allocation3 + $0x3f8] sm:$0xff]
    %v208 = vld [vmem:[#allocation3 + $0x400] sm:$0xff]
    %v209 = vld [vmem:[#allocation3 + $0x408] sm:$0xff]
    %v210 = vld [vmem:[#allocation3 + $0x410] sm:$0xff]
    %v211 = vld [vmem:[#allocation3 + $0x418] sm:$0xff]
    %v212 = vld [vmem:[#allocation3 + $0x420] sm:$0xff]
    %v213 = vld [vmem:[#allocation3 + $0x428] sm:$0xff]
    %v214 = vld [vmem:[#allocation3 + $0x430] sm:$0xff]
    %v215 = vld [vmem:[#allocation3 + $0x438] sm:$0xff]
    %v216 = vld [vmem:[#allocation3 + $0x440] sm:$0xff]
    %v217 = vld [vmem:[#allocation3 + $0x448] sm:$0xff]
    %v218 = vld [vmem:[#allocation3 + $0x450] sm:$0xff]
    %v219 = vld [vmem:[#allocation3 + $0x458] sm:$0xff]
    %v220 = vld [vmem:[#allocation3 + $0x460] sm:$0xff]
    %v221 = vld [vmem:[#allocation3 + $0x468] sm:$0xff]
    %v222 = vld [vmem:[#allocation3 + $0x470] sm:$0xff]
    %v223 = vld [vmem:[#allocation3 + $0x478] sm:$0xff]
    %v224 = vld [vmem:[#allocation3 + $0x480] sm:$0xff]
    %v225 = vld [vmem:[#allocation3 + $0x488] sm:$0xff]
    %v226 = vld [vmem:[#allocation3 + $0x490] sm:$0xff]
    %v227 = vld [vmem:[#allocation3 + $0x498] sm:$0xff]
    %v228 = vld [vmem:[#allocation3 + $0x4a0] sm:$0xff]
    %v229 = vld [vmem:[#allocation3 + $0x4a8] sm:$0xff]
    %v230 = vld [vmem:[#allocation3 + $0x4b0] sm:$0xff]
    %v231 = vld [vmem:[#allocation3 + $0x4b8] sm:$0xff]
    %v232 = vld [vmem:[#allocation3 + $0x4c0] sm:$0xff]
    %v233 = vld [vmem:[#allocation3 + $0x4c8] sm:$0xff]
    %v234 = vld [vmem:[#allocation3 + $0x4d0] sm:$0xff]
    %v235 = vld [vmem:[#allocation3 + $0x4d8] sm:$0xff]
    %v236 = vld [vmem:[#allocation3 + $0x4e0] sm:$0xff]
    %v237 = vld [vmem:[#allocation3 + $0x4e8] sm:$0xff]
    %v238 = vld [vmem:[#allocation3 + $0x4f0] sm:$0xff]
    %v239 = vld [vmem:[#allocation3 + $0x4f8] sm:$0xff]
    %v240 = vld [vmem:[#allocation3 + $0x500] sm:$0xff]
    %v241 = vld [vmem:[#allocation3 + $0x508] sm:$0xff]
    %v242 = vld [vmem:[#allocation3 + $0x510] sm:$0xff]
    %v243 = vld [vmem:[#allocation3 + $0x518] sm:$0xff]
    %v244 = vld [vmem:[#allocation3 + $0x520] sm:$0xff]
    %v245 = vld [vmem:[#allocation3 + $0x528] sm:$0xff]
    %v246 = vld [vmem:[#allocation3 + $0x530] sm:$0xff]
    %v247 = vld [vmem:[#allocation3 + $0x538] sm:$0xff]
    %v248 = vld [vmem:[#allocation3 + $0x540] sm:$0xff]
    %v249 = vld [vmem:[#allocation3 + $0x548] sm:$0xff]
    %v250 = vld [vmem:[#allocation3 + $0x550] sm:$0xff]
    %v251 = vld [vmem:[#allocation3 + $0x558] sm:$0xff]
    %v252 = vld [vmem:[#allocation3 + $0x560] sm:$0xff]
    %v253 = vld [vmem:[#allocation3 + $0x568] sm:$0xff]
    %v254 = vld [vmem:[#allocation3 + $0x570] sm:$0xff]
    %v255 = vld [vmem:[#allocation3 + $0x578] sm:$0xff]
    %v256 = vld [vmem:[#allocation3 + $0x580] sm:$0xff]
    %v257 = vld [vmem:[#allocation3 + $0x588] sm:$0xff]
    %v258 = vld [vmem:[#allocation3 + $0x590] sm:$0xff]
    %v259 = vld [vmem:[#allocation3 + $0x598] sm:$0xff]
    %v260 = vld [vmem:[#allocation3 + $0x5a0] sm:$0xff]
    %v261 = vld [vmem:[#allocation3 + $0x5a8] sm:$0xff]
    %v262 = vld [vmem:[#allocation3 + $0x5b0] sm:$0xff]
    %v263 = vld [vmem:[#allocation3 + $0x5b8] sm:$0xff]
    %v264 = vld [vmem:[#allocation3 + $0x5c0] sm:$0xff]
    %v265 = vld [vmem:[#allocation3 + $0x5c8] sm:$0xff]
    %v266 = vld [vmem:[#allocation3 + $0x5d0] sm:$0xff]
    %v267 = vld [vmem:[#allocation3 + $0x5d8] sm:$0xff]
    %v268 = vld [vmem:[#allocation3 + $0x5e0] sm:$0xff]
    %v269 = vld [vmem:[#allocation3 + $0x5e8] sm:$0xff]
    %v270 = vld [vmem:[#allocation3 + $0x5f0] sm:$0xff]
    %v271 = vld [vmem:[#allocation3 + $0x5f8] sm:$0xff]
    %v272 = vld [vmem:[#allocation3 + $0x600] sm:$0xff]
    %v273 = vld [vmem:[#allocation3 + $0x608] sm:$0xff]
    %v274 = vld [vmem:[#allocation3 + $0x610] sm:$0xff]
    %v275 = vld [vmem:[#allocation3 + $0x618] sm:$0xff]
    %v276 = vld [vmem:[#allocation3 + $0x620] sm:$0xff]
    %v277 = vld [vmem:[#allocation3 + $0x628] sm:$0xff]
    %v278 = vld [vmem:[#allocation3 + $0x630] sm:$0xff]
    %v279 = vld [vmem:[#allocation3 + $0x638] sm:$0xff]
    %v280 = vld [vmem:[#allocation3 + $0x640] sm:$0xff]
    %v281 = vld [vmem:[#allocation3 + $0x648] sm:$0xff]
    %v282 = vld [vmem:[#allocation3 + $0x650] sm:$0xff]
    %v283 = vld [vmem:[#allocation3 + $0x658] sm:$0xff]
    %v284 = vld [vmem:[#allocation3 + $0x660] sm:$0xff]
    %v285 = vld [vmem:[#allocation3 + $0x668] sm:$0xff]
    %v286 = vld [vmem:[#allocation3 + $0x670] sm:$0xff]
    %v287 = vld [vmem:[#allocation3 + $0x678] sm:$0xff]
    %v288 = vld [vmem:[#allocation3 + $0x680] sm:$0xff]
    %v289 = vld [vmem:[#allocation3 + $0x688] sm:$0xff]
    %v290 = vld [vmem:[#allocation3 + $0x690] sm:$0xff]
    %v291 = vld [vmem:[#allocation3 + $0x698] sm:$0xff]
    %v292 = vld [vmem:[#allocation3 + $0x6a0] sm:$0xff]
    %v293 = vld [vmem:[#allocation3 + $0x6a8] sm:$0xff]
    %v294 = vld [vmem:[#allocation3 + $0x6b0] sm:$0xff]
    %v295 = vld [vmem:[#allocation3 + $0x6b8] sm:$0xff]
    %v296 = vld [vmem:[#allocation3 + $0x6c0] sm:$0xff]
    %v297 = vld [vmem:[#allocation3 + $0x6c8] sm:$0xff]
    %v298 = vld [vmem:[#allocation3 + $0x6d0] sm:$0xff]
    %v299 = vld [vmem:[#allocation3 + $0x6d8] sm:$0xff]
    %v300 = vld [vmem:[#allocation3 + $0x6e0] sm:$0xff]
    %v301 = vld [vmem:[#allocation3 + $0x6e8] sm:$0xff]
    %v302 = vld [vmem:[#allocation3 + $0x6f0] sm:$0xff]
    %v303 = vld [vmem:[#allocation3 + $0x6f8] sm:$0xff]
    %v304 = vld [vmem:[%s2] sm:$0xf]
    %v306 = vlaneseq
    %v307 = vshrl.u32 %v306, 7
    %v308 = vsub.s32 0, %v307
    %v309 = vrot.slane %v304, %v308
    %v310 = vlaneseq
    %v311 = vshrl.u32 %v310, 7
    %v312 = vsub.s32 1, %v311
    %v313 = vrot.slane %v304, %v312
    %v314 = vlaneseq
    %v315 = vshrl.u32 %v314, 7
    %v316 = vsub.s32 2, %v315
    %v317 = vrot.slane %v304, %v316
    %v318 = vlaneseq
    %v319 = vshrl.u32 %v318, 7
    %v320 = vsub.s32 3, %v319
    %v321 = vrot.slane %v304, %v320
    %v330 = vunpack.c.l.b16 %v76
    %v331 = vunpack.c.h.b16 %v76
    %v332 = vunpack.c.l.b16 %v77
    %v333 = vunpack.c.h.b16 %v77
    %v334 = vunpack.c.l.b16 %v78
    %v335 = vunpack.c.h.b16 %v78
    %v336 = vunpack.c.l.b16 %v79
    %v337 = vpack.c.b16 %v330, %v330
    %v338 = vpack.c.b16 %v331, %v331
    %v339 = vpack.c.b16 %v332, %v332
    %v340 = vpack.c.b16 %v333, %v333
    %v341 = vpack.c.b16 %v334, %v334
    %v342 = vpack.c.b16 %v335, %v335
    %v343 = vpack.c.b16 %v336, %v336
    %v575 = vunpack.c.l.b16 %v80
    %v576 = vunpack.c.h.b16 %v80
    %v577 = vunpack.c.l.b16 %v81
    %v578 = vunpack.c.h.b16 %v81
    %v579 = vunpack.c.l.b16 %v82
    %v580 = vunpack.c.h.b16 %v82
    %v581 = vunpack.c.l.b16 %v83
    %v582 = vunpack.c.h.b16 %v83
    %v583 = vunpack.c.l.b16 %v84
    %v584 = vunpack.c.h.b16 %v84
    %v585 = vunpack.c.l.b16 %v85
    %v586 = vunpack.c.h.b16 %v85
    %v587 = vunpack.c.l.b16 %v86
    %v588 = vunpack.c.h.b16 %v86
    %v589 = vunpack.c.l.b16 %v87
    %v590 = vunpack.c.h.b16 %v87
    %v591 = vunpack.c.l.b16 %v88
    %v592 = vunpack.c.h.b16 %v88
    %v593 = vunpack.c.l.b16 %v89
    %v594 = vunpack.c.h.b16 %v89
    %v595 = vunpack.c.l.b16 %v90
    %v596 = vunpack.c.h.b16 %v90
    %v597 = vunpack.c.l.b16 %v91
    %v598 = vunpack.c.h.b16 %v91
    %v599 = vunpack.c.l.b16 %v92
    %v600 = vunpack.c.h.b16 %v92
    %v601 = vunpack.c.l.b16 %v93
    %v602 = vunpack.c.h.b16 %v93
    %v603 = vunpack.c.l.b16 %v94
    %v604 = vunpack.c.h.b16 %v94
    %v605 = vunpack.c.l.b16 %v95
    %v606 = vunpack.c.h.b16 %v95
    %v607 = vunpack.c.l.b16 %v96
    %v608 = vunpack.c.h.b16 %v96
    %v609 = vunpack.c.l.b16 %v97
    %v610 = vunpack.c.h.b16 %v97
    %v611 = vunpack.c.l.b16 %v98
    %v612 = vunpack.c.h.b16 %v98
    %v613 = vunpack.c.l.b16 %v99
    %v614 = vunpack.c.h.b16 %v99
    %v615 = vunpack.c.l.b16 %v100
    %v616 = vunpack.c.h.b16 %v100
    %v617 = vunpack.c.l.b16 %v101
    %v618 = vunpack.c.h.b16 %v101
    %v619 = vunpack.c.l.b16 %v102
    %v620 = vunpack.c.h.b16 %v102
    %v621 = vunpack.c.l.b16 %v103
    %v622 = vunpack.c.h.b16 %v103
    %v623 = vunpack.c.l.b16 %v104
    %v624 = vunpack.c.h.b16 %v104
    %v625 = vunpack.c.l.b16 %v105
    %v626 = vunpack.c.h.b16 %v105
    %v627 = vunpack.c.l.b16 %v106
    %v628 = vunpack.c.h.b16 %v106
    %v629 = vunpack.c.l.b16 %v107
    %v630 = vunpack.c.h.b16 %v107
    %v631 = vunpack.c.l.b16 %v108
    %v632 = vunpack.c.h.b16 %v108
    %v633 = vunpack.c.l.b16 %v109
    %v634 = vunpack.c.h.b16 %v109
    %v635 = vunpack.c.l.b16 %v110
    %v636 = vunpack.c.h.b16 %v110
    %v637 = vunpack.c.l.b16 %v111
    %v638 = vunpack.c.h.b16 %v111
    %v639 = vunpack.c.l.b16 %v112
    %v640 = vunpack.c.h.b16 %v112
    %v641 = vunpack.c.l.b16 %v113
    %v642 = vunpack.c.h.b16 %v113
    %v643 = vunpack.c.l.b16 %v114
    %v644 = vunpack.c.h.b16 %v114
    %v645 = vunpack.c.l.b16 %v115
    %v646 = vunpack.c.h.b16 %v115
    %v647 = vunpack.c.l.b16 %v116
    %v648 = vunpack.c.h.b16 %v116
    %v649 = vunpack.c.l.b16 %v117
    %v650 = vunpack.c.h.b16 %v117
    %v651 = vunpack.c.l.b16 %v118
    %v652 = vunpack.c.h.b16 %v118
    %v653 = vunpack.c.l.b16 %v119
    %v654 = vunpack.c.h.b16 %v119
    %v655 = vunpack.c.l.b16 %v120
    %v656 = vunpack.c.h.b16 %v120
    %v657 = vunpack.c.l.b16 %v121
    %v658 = vunpack.c.h.b16 %v121
    %v659 = vunpack.c.l.b16 %v122
    %v660 = vunpack.c.h.b16 %v122
    %v661 = vunpack.c.l.b16 %v123
    %v662 = vunpack.c.h.b16 %v123
    %v663 = vunpack.c.l.b16 %v124
    %v664 = vunpack.c.h.b16 %v124
    %v665 = vunpack.c.l.b16 %v125
    %v666 = vunpack.c.h.b16 %v125
    %v667 = vunpack.c.l.b16 %v126
    %v668 = vunpack.c.h.b16 %v126
    %v669 = vunpack.c.l.b16 %v127
    %v670 = vunpack.c.h.b16 %v127
    %v671 = vunpack.c.l.b16 %v128
    %v672 = vunpack.c.h.b16 %v128
    %v673 = vunpack.c.l.b16 %v129
    %v674 = vunpack.c.h.b16 %v129
    %v675 = vunpack.c.l.b16 %v130
    %v676 = vunpack.c.h.b16 %v130
    %v677 = vunpack.c.l.b16 %v131
    %v678 = vunpack.c.h.b16 %v131
    %v679 = vunpack.c.l.b16 %v132
    %v680 = vunpack.c.h.b16 %v132
    %v681 = vunpack.c.l.b16 %v133
    %v682 = vunpack.c.h.b16 %v133
    %v683 = vunpack.c.l.b16 %v134
    %v684 = vunpack.c.h.b16 %v134
    %v685 = vunpack.c.l.b16 %v135
    %v686 = vunpack.c.h.b16 %v135
    %v687 = vunpack.c.l.b16 %v136
    %v688 = vunpack.c.h.b16 %v136
    %v689 = vunpack.c.l.b16 %v137
    %v690 = vunpack.c.h.b16 %v137
    %v691 = vunpack.c.l.b16 %v138
    %v692 = vunpack.c.h.b16 %v138
    %v693 = vunpack.c.l.b16 %v139
    %v694 = vunpack.c.h.b16 %v139
    %v695 = vunpack.c.l.b16 %v140
    %v696 = vunpack.c.h.b16 %v140
    %v697 = vunpack.c.l.b16 %v141
    %v698 = vunpack.c.h.b16 %v141
    %v699 = vunpack.c.l.b16 %v142
    %v700 = vunpack.c.h.b16 %v142
    %v701 = vunpack.c.l.b16 %v143
    %v702 = vunpack.c.h.b16 %v143
    %v703 = vunpack.c.l.b16 %v144
    %v704 = vunpack.c.h.b16 %v144
    %v705 = vunpack.c.l.b16 %v145
    %v706 = vunpack.c.h.b16 %v145
    %v707 = vunpack.c.l.b16 %v146
    %v708 = vunpack.c.h.b16 %v146
    %v709 = vunpack.c.l.b16 %v147
    %v710 = vunpack.c.h.b16 %v147
    %v711 = vunpack.c.l.b16 %v148
    %v712 = vunpack.c.h.b16 %v148
    %v713 = vunpack.c.l.b16 %v149
    %v714 = vunpack.c.h.b16 %v149
    %v715 = vunpack.c.l.b16 %v150
    %v716 = vunpack.c.h.b16 %v150
    %v717 = vunpack.c.l.b16 %v151
    %v718 = vunpack.c.h.b16 %v151
    %v719 = vunpack.c.l.b16 %v152
    %v720 = vunpack.c.h.b16 %v152
    %v721 = vunpack.c.l.b16 %v153
    %v722 = vunpack.c.h.b16 %v153
    %v723 = vunpack.c.l.b16 %v154
    %v724 = vunpack.c.h.b16 %v154
    %v725 = vunpack.c.l.b16 %v155
    %v726 = vunpack.c.h.b16 %v155
    %v727 = vunpack.c.l.b16 %v156
    %v728 = vunpack.c.h.b16 %v156
    %v729 = vunpack.c.l.b16 %v157
    %v730 = vunpack.c.h.b16 %v157
    %v731 = vunpack.c.l.b16 %v158
    %v732 = vunpack.c.h.b16 %v158
    %v733 = vunpack.c.l.b16 %v159
    %v734 = vunpack.c.h.b16 %v159
    %v735 = vunpack.c.l.b16 %v160
    %v736 = vunpack.c.h.b16 %v160
    %v737 = vunpack.c.l.b16 %v161
    %v738 = vunpack.c.h.b16 %v161
    %v739 = vunpack.c.l.b16 %v162
    %v740 = vunpack.c.h.b16 %v162
    %v741 = vunpack.c.l.b16 %v163
    %v742 = vunpack.c.h.b16 %v163
    %v743 = vunpack.c.l.b16 %v164
    %v744 = vunpack.c.h.b16 %v164
    %v745 = vunpack.c.l.b16 %v165
    %v746 = vunpack.c.h.b16 %v165
    %v747 = vunpack.c.l.b16 %v166
    %v748 = vunpack.c.h.b16 %v166
    %v749 = vunpack.c.l.b16 %v167
    %v750 = vunpack.c.h.b16 %v167
    %v751 = vunpack.c.l.b16 %v168
    %v752 = vunpack.c.h.b16 %v168
    %v753 = vunpack.c.l.b16 %v169
    %v754 = vunpack.c.h.b16 %v169
    %v755 = vunpack.c.l.b16 %v170
    %v756 = vunpack.c.h.b16 %v170
    %v757 = vunpack.c.l.b16 %v171
    %v758 = vunpack.c.h.b16 %v171
    %v759 = vunpack.c.l.b16 %v172
    %v760 = vunpack.c.h.b16 %v172
    %v761 = vunpack.c.l.b16 %v173
    %v762 = vunpack.c.h.b16 %v173
    %v763 = vunpack.c.l.b16 %v174
    %v764 = vunpack.c.h.b16 %v174
    %v765 = vunpack.c.l.b16 %v175
    %v766 = vunpack.c.h.b16 %v175
    %v767 = vunpack.c.l.b16 %v176
    %v768 = vunpack.c.h.b16 %v176
    %v769 = vunpack.c.l.b16 %v177
    %v770 = vunpack.c.h.b16 %v177
    %v771 = vunpack.c.l.b16 %v178
    %v772 = vunpack.c.h.b16 %v178
    %v773 = vunpack.c.l.b16 %v179
    %v774 = vunpack.c.h.b16 %v179
    %v775 = vunpack.c.l.b16 %v180
    %v776 = vunpack.c.h.b16 %v180
    %v777 = vunpack.c.l.b16 %v181
    %v778 = vunpack.c.h.b16 %v181
    %v779 = vunpack.c.l.b16 %v182
    %v780 = vunpack.c.h.b16 %v182
    %v781 = vunpack.c.l.b16 %v183
    %v782 = vunpack.c.h.b16 %v183
    %v783 = vunpack.c.l.b16 %v184
    %v784 = vunpack.c.h.b16 %v184
    %v785 = vunpack.c.l.b16 %v185
    %v786 = vunpack.c.h.b16 %v185
    %v787 = vunpack.c.l.b16 %v186
    %v788 = vunpack.c.h.b16 %v186
    %v789 = vunpack.c.l.b16 %v187
    %v790 = vunpack.c.h.b16 %v187
    %v791 = vunpack.c.l.b16 %v188
    %v792 = vunpack.c.h.b16 %v188
    %v793 = vunpack.c.l.b16 %v189
    %v794 = vunpack.c.h.b16 %v189
    %v795 = vunpack.c.l.b16 %v190
    %v796 = vunpack.c.h.b16 %v190
    %v797 = vunpack.c.l.b16 %v191
    %v798 = vunpack.c.h.b16 %v191
    %v799 = vunpack.c.l.b16 %v192
    %v800 = vunpack.c.h.b16 %v192
    %v801 = vunpack.c.l.b16 %v193
    %v802 = vunpack.c.h.b16 %v193
    %v803 = vunpack.c.l.b16 %v194
    %v804 = vunpack.c.h.b16 %v194
    %v805 = vunpack.c.l.b16 %v195
    %v806 = vunpack.c.h.b16 %v195
    %v807 = vunpack.c.l.b16 %v196
    %v808 = vunpack.c.h.b16 %v196
    %v809 = vunpack.c.l.b16 %v197
    %v810 = vunpack.c.h.b16 %v197
    %v811 = vunpack.c.l.b16 %v198
    %v812 = vunpack.c.h.b16 %v198
    %v813 = vunpack.c.l.b16 %v199
    %v814 = vunpack.c.h.b16 %v199
    %v815 = vunpack.c.l.b16 %v200
    %v816 = vunpack.c.h.b16 %v200
    %v817 = vunpack.c.l.b16 %v201
    %v818 = vunpack.c.h.b16 %v201
    %v819 = vunpack.c.l.b16 %v202
    %v820 = vunpack.c.h.b16 %v202
    %v821 = vunpack.c.l.b16 %v203
    %v822 = vunpack.c.h.b16 %v203
    %v823 = vunpack.c.l.b16 %v204
    %v824 = vunpack.c.h.b16 %v204
    %v825 = vunpack.c.l.b16 %v205
    %v826 = vunpack.c.h.b16 %v205
    %v827 = vunpack.c.l.b16 %v206
    %v828 = vunpack.c.h.b16 %v206
    %v829 = vunpack.c.l.b16 %v207
    %v830 = vunpack.c.h.b16 %v207
    %v831 = vunpack.c.l.b16 %v208
    %v832 = vunpack.c.h.b16 %v208
    %v833 = vunpack.c.l.b16 %v209
    %v834 = vunpack.c.h.b16 %v209
    %v835 = vunpack.c.l.b16 %v210
    %v836 = vunpack.c.h.b16 %v210
    %v837 = vunpack.c.l.b16 %v211
    %v838 = vunpack.c.h.b16 %v211
    %v839 = vunpack.c.l.b16 %v212
    %v840 = vunpack.c.h.b16 %v212
    %v841 = vunpack.c.l.b16 %v213
    %v842 = vunpack.c.h.b16 %v213
    %v843 = vunpack.c.l.b16 %v214
    %v844 = vunpack.c.h.b16 %v214
    %v845 = vunpack.c.l.b16 %v215
    %v846 = vunpack.c.h.b16 %v215
    %v847 = vunpack.c.l.b16 %v216
    %v848 = vunpack.c.h.b16 %v216
    %v849 = vunpack.c.l.b16 %v217
    %v850 = vunpack.c.h.b16 %v217
    %v851 = vunpack.c.l.b16 %v218
    %v852 = vunpack.c.h.b16 %v218
    %v853 = vunpack.c.l.b16 %v219
    %v854 = vunpack.c.h.b16 %v219
    %v855 = vunpack.c.l.b16 %v220
    %v856 = vunpack.c.h.b16 %v220
    %v857 = vunpack.c.l.b16 %v221
    %v858 = vunpack.c.h.b16 %v221
    %v859 = vunpack.c.l.b16 %v222
    %v860 = vunpack.c.h.b16 %v222
    %v861 = vunpack.c.l.b16 %v223
    %v862 = vunpack.c.h.b16 %v223
    %v863 = vunpack.c.l.b16 %v224
    %v864 = vunpack.c.h.b16 %v224
    %v865 = vunpack.c.l.b16 %v225
    %v866 = vunpack.c.h.b16 %v225
    %v867 = vunpack.c.l.b16 %v226
    %v868 = vunpack.c.h.b16 %v226
    %v869 = vunpack.c.l.b16 %v227
    %v870 = vunpack.c.h.b16 %v227
    %v871 = vunpack.c.l.b16 %v228
    %v872 = vunpack.c.h.b16 %v228
    %v873 = vunpack.c.l.b16 %v229
    %v874 = vunpack.c.h.b16 %v229
    %v875 = vunpack.c.l.b16 %v230
    %v876 = vunpack.c.h.b16 %v230
    %v877 = vunpack.c.l.b16 %v231
    %v878 = vunpack.c.h.b16 %v231
    %v879 = vunpack.c.l.b16 %v232
    %v880 = vunpack.c.h.b16 %v232
    %v881 = vunpack.c.l.b16 %v233
    %v882 = vunpack.c.h.b16 %v233
    %v883 = vunpack.c.l.b16 %v234
    %v884 = vunpack.c.h.b16 %v234
    %v885 = vunpack.c.l.b16 %v235
    %v886 = vunpack.c.h.b16 %v235
    %v887 = vunpack.c.l.b16 %v236
    %v888 = vunpack.c.h.b16 %v236
    %v889 = vunpack.c.l.b16 %v237
    %v890 = vunpack.c.h.b16 %v237
    %v891 = vunpack.c.l.b16 %v238
    %v892 = vunpack.c.h.b16 %v238
    %v893 = vunpack.c.l.b16 %v239
    %v894 = vunpack.c.h.b16 %v239
    %v895 = vunpack.c.l.b16 %v240
    %v896 = vunpack.c.h.b16 %v240
    %v897 = vunpack.c.l.b16 %v241
    %v898 = vunpack.c.h.b16 %v241
    %v899 = vunpack.c.l.b16 %v242
    %v900 = vunpack.c.h.b16 %v242
    %v901 = vunpack.c.l.b16 %v243
    %v902 = vunpack.c.h.b16 %v243
    %v903 = vunpack.c.l.b16 %v244
    %v904 = vunpack.c.h.b16 %v244
    %v905 = vunpack.c.l.b16 %v245
    %v906 = vunpack.c.h.b16 %v245
    %v907 = vunpack.c.l.b16 %v246
    %v908 = vunpack.c.h.b16 %v246
    %v909 = vunpack.c.l.b16 %v247
    %v910 = vunpack.c.h.b16 %v247
    %v911 = vunpack.c.l.b16 %v248
    %v912 = vunpack.c.h.b16 %v248
    %v913 = vunpack.c.l.b16 %v249
    %v914 = vunpack.c.h.b16 %v249
    %v915 = vunpack.c.l.b16 %v250
    %v916 = vunpack.c.h.b16 %v250
    %v917 = vunpack.c.l.b16 %v251
    %v918 = vunpack.c.h.b16 %v251
    %v919 = vunpack.c.l.b16 %v252
    %v920 = vunpack.c.h.b16 %v252
    %v921 = vunpack.c.l.b16 %v253
    %v922 = vunpack.c.h.b16 %v253
    %v923 = vunpack.c.l.b16 %v254
    %v924 = vunpack.c.h.b16 %v254
    %v925 = vunpack.c.l.b16 %v255
    %v926 = vunpack.c.h.b16 %v255
    %v927 = vunpack.c.l.b16 %v256
    %v928 = vunpack.c.h.b16 %v256
    %v929 = vunpack.c.l.b16 %v257
    %v930 = vunpack.c.h.b16 %v257
    %v931 = vunpack.c.l.b16 %v258
    %v932 = vunpack.c.h.b16 %v258
    %v933 = vunpack.c.l.b16 %v259
    %v934 = vunpack.c.h.b16 %v259
    %v935 = vunpack.c.l.b16 %v260
    %v936 = vunpack.c.h.b16 %v260
    %v937 = vunpack.c.l.b16 %v261
    %v938 = vunpack.c.h.b16 %v261
    %v939 = vunpack.c.l.b16 %v262
    %v940 = vunpack.c.h.b16 %v262
    %v941 = vunpack.c.l.b16 %v263
    %v942 = vunpack.c.h.b16 %v263
    %v943 = vunpack.c.l.b16 %v264
    %v944 = vunpack.c.h.b16 %v264
    %v945 = vunpack.c.l.b16 %v265
    %v946 = vunpack.c.h.b16 %v265
    %v947 = vunpack.c.l.b16 %v266
    %v948 = vunpack.c.h.b16 %v266
    %v949 = vunpack.c.l.b16 %v267
    %v950 = vunpack.c.h.b16 %v267
    %v951 = vunpack.c.l.b16 %v268
    %v952 = vunpack.c.h.b16 %v268
    %v953 = vunpack.c.l.b16 %v269
    %v954 = vunpack.c.h.b16 %v269
    %v955 = vunpack.c.l.b16 %v270
    %v956 = vunpack.c.h.b16 %v270
    %v957 = vunpack.c.l.b16 %v271
    %v958 = vunpack.c.h.b16 %v271
    %v959 = vunpack.c.l.b16 %v272
    %v960 = vunpack.c.h.b16 %v272
    %v961 = vunpack.c.l.b16 %v273
    %v962 = vunpack.c.h.b16 %v273
    %v963 = vunpack.c.l.b16 %v274
    %v964 = vunpack.c.h.b16 %v274
    %v965 = vunpack.c.l.b16 %v275
    %v966 = vunpack.c.h.b16 %v275
    %v967 = vunpack.c.l.b16 %v276
    %v968 = vunpack.c.h.b16 %v276
    %v969 = vunpack.c.l.b16 %v277
    %v970 = vunpack.c.h.b16 %v277
    %v971 = vunpack.c.l.b16 %v278
    %v972 = vunpack.c.h.b16 %v278
    %v973 = vunpack.c.l.b16 %v279
    %v974 = vunpack.c.h.b16 %v279
    %v975 = vunpack.c.l.b16 %v280
    %v976 = vunpack.c.h.b16 %v280
    %v977 = vunpack.c.l.b16 %v281
    %v978 = vunpack.c.h.b16 %v281
    %v979 = vunpack.c.l.b16 %v282
    %v980 = vunpack.c.h.b16 %v282
    %v981 = vunpack.c.l.b16 %v283
    %v982 = vunpack.c.h.b16 %v283
    %v983 = vunpack.c.l.b16 %v284
    %v984 = vunpack.c.h.b16 %v284
    %v985 = vunpack.c.l.b16 %v285
    %v986 = vunpack.c.h.b16 %v285
    %v987 = vunpack.c.l.b16 %v286
    %v988 = vunpack.c.h.b16 %v286
    %v989 = vunpack.c.l.b16 %v287
    %v990 = vunpack.c.h.b16 %v287
    %v991 = vunpack.c.l.b16 %v288
    %v992 = vunpack.c.h.b16 %v288
    %v993 = vunpack.c.l.b16 %v289
    %v994 = vunpack.c.h.b16 %v289
    %v995 = vunpack.c.l.b16 %v290
    %v996 = vunpack.c.h.b16 %v290
    %v997 = vunpack.c.l.b16 %v291
    %v998 = vunpack.c.h.b16 %v291
    %v999 = vunpack.c.l.b16 %v292
    %v1000 = vunpack.c.h.b16 %v292
    %v1001 = vunpack.c.l.b16 %v293
    %v1002 = vunpack.c.h.b16 %v293
    %v1003 = vunpack.c.l.b16 %v294
    %v1004 = vunpack.c.h.b16 %v294
    %v1005 = vunpack.c.l.b16 %v295
    %v1006 = vunpack.c.h.b16 %v295
    %v1007 = vunpack.c.l.b16 %v296
    %v1008 = vunpack.c.h.b16 %v296
    %v1009 = vunpack.c.l.b16 %v297
    %v1010 = vunpack.c.h.b16 %v297
    %v1011 = vunpack.c.l.b16 %v298
    %v1012 = vunpack.c.h.b16 %v298
    %v1013 = vunpack.c.l.b16 %v299
    %v1014 = vunpack.c.h.b16 %v299
    %v1015 = vunpack.c.l.b16 %v300
    %v1016 = vunpack.c.h.b16 %v300
    %v1017 = vunpack.c.l.b16 %v301
    %v1018 = vunpack.c.h.b16 %v301
    %v1019 = vunpack.c.l.b16 %v302
    %v1020 = vunpack.c.h.b16 %v302
    %v1021 = vunpack.c.l.b16 %v303
    %v1022 = vunpack.c.h.b16 %v303
    %v1023 = vpack.c.b16 %v579, %v575
    %v1024 = vpack.c.b16 %v580, %v576
    %v1025 = vpack.c.b16 %v581, %v577
    %v1026 = vpack.c.b16 %v582, %v578
    %v1027 = vpack.c.b16 %v587, %v583
    %v1028 = vpack.c.b16 %v588, %v584
    %v1029 = vpack.c.b16 %v589, %v585
    %v1030 = vpack.c.b16 %v590, %v586
    %v1031 = vpack.c.b16 %v595, %v591
    %v1032 = vpack.c.b16 %v596, %v592
    %v1033 = vpack.c.b16 %v597, %v593
    %v1034 = vpack.c.b16 %v598, %v594
    %v1035 = vpack.c.b16 %v603, %v599
    %v1036 = vpack.c.b16 %v604, %v600
    %v1037 = vpack.c.b16 %v605, %v601
    %v1038 = vpack.c.b16 %v606, %v602
    %v1039 = vpack.c.b16 %v611, %v607
    %v1040 = vpack.c.b16 %v612, %v608
    %v1041 = vpack.c.b16 %v613, %v609
    %v1042 = vpack.c.b16 %v614, %v610
    %v1043 = vpack.c.b16 %v619, %v615
    %v1044 = vpack.c.b16 %v620, %v616
    %v1045 = vpack.c.b16 %v621, %v617
    %v1046 = vpack.c.b16 %v622, %v618
    %v1047 = vpack.c.b16 %v627, %v623
    %v1048 = vpack.c.b16 %v628, %v624
    %v1049 = vpack.c.b16 %v629, %v625
    %v1050 = vpack.c.b16 %v630, %v626
    %v1051 = vpack.c.b16 %v635, %v631
    %v1052 = vpack.c.b16 %v636, %v632
    %v1053 = vpack.c.b16 %v637, %v633
    %v1054 = vpack.c.b16 %v638, %v634
    %v1055 = vpack.c.b16 %v643, %v639
    %v1056 = vpack.c.b16 %v644, %v640
    %v1057 = vpack.c.b16 %v645, %v641
    %v1058 = vpack.c.b16 %v646, %v642
    %v1059 = vpack.c.b16 %v651, %v647
    %v1060 = vpack.c.b16 %v652, %v648
    %v1061 = vpack.c.b16 %v653, %v649
    %v1062 = vpack.c.b16 %v654, %v650
    %v1063 = vpack.c.b16 %v659, %v655
    %v1064 = vpack.c.b16 %v660, %v656
    %v1065 = vpack.c.b16 %v661, %v657
    %v1066 = vpack.c.b16 %v662, %v658
    %v1067 = vpack.c.b16 %v667, %v663
    %v1068 = vpack.c.b16 %v668, %v664
    %v1069 = vpack.c.b16 %v669, %v665
    %v1070 = vpack.c.b16 %v670, %v666
    %v1071 = vpack.c.b16 %v675, %v671
    %v1072 = vpack.c.b16 %v676, %v672
    %v1073 = vpack.c.b16 %v677, %v673
    %v1074 = vpack.c.b16 %v678, %v674
    %v1075 = vpack.c.b16 %v683, %v679
    %v1076 = vpack.c.b16 %v684, %v680
    %v1077 = vpack.c.b16 %v685, %v681
    %v1078 = vpack.c.b16 %v686, %v682
    %v1079 = vpack.c.b16 %v691, %v687
    %v1080 = vpack.c.b16 %v692, %v688
    %v1081 = vpack.c.b16 %v693, %v689
    %v1082 = vpack.c.b16 %v694, %v690
    %v1083 = vpack.c.b16 %v699, %v695
    %v1084 = vpack.c.b16 %v700, %v696
    %v1085 = vpack.c.b16 %v701, %v697
    %v1086 = vpack.c.b16 %v702, %v698
    %v1087 = vpack.c.b16 %v707, %v703
    %v1088 = vpack.c.b16 %v708, %v704
    %v1089 = vpack.c.b16 %v709, %v705
    %v1090 = vpack.c.b16 %v710, %v706
    %v1091 = vpack.c.b16 %v715, %v711
    %v1092 = vpack.c.b16 %v716, %v712
    %v1093 = vpack.c.b16 %v717, %v713
    %v1094 = vpack.c.b16 %v718, %v714
    %v1095 = vpack.c.b16 %v723, %v719
    %v1096 = vpack.c.b16 %v724, %v720
    %v1097 = vpack.c.b16 %v725, %v721
    %v1098 = vpack.c.b16 %v726, %v722
    %v1099 = vpack.c.b16 %v731, %v727
    %v1100 = vpack.c.b16 %v732, %v728
    %v1101 = vpack.c.b16 %v733, %v729
    %v1102 = vpack.c.b16 %v734, %v730
    %v1103 = vpack.c.b16 %v739, %v735
    %v1104 = vpack.c.b16 %v740, %v736
    %v1105 = vpack.c.b16 %v741, %v737
    %v1106 = vpack.c.b16 %v742, %v738
    %v1107 = vpack.c.b16 %v747, %v743
    %v1108 = vpack.c.b16 %v748, %v744
    %v1109 = vpack.c.b16 %v749, %v745
    %v1110 = vpack.c.b16 %v750, %v746
    %v1111 = vpack.c.b16 %v755, %v751
    %v1112 = vpack.c.b16 %v756, %v752
    %v1113 = vpack.c.b16 %v757, %v753
    %v1114 = vpack.c.b16 %v758, %v754
    %v1115 = vpack.c.b16 %v763, %v759
    %v1116 = vpack.c.b16 %v764, %v760
    %v1117 = vpack.c.b16 %v765, %v761
    %v1118 = vpack.c.b16 %v766, %v762
    %v1119 = vpack.c.b16 %v771, %v767
    %v1120 = vpack.c.b16 %v772, %v768
    %v1121 = vpack.c.b16 %v773, %v769
    %v1122 = vpack.c.b16 %v774, %v770
    %v1123 = vpack.c.b16 %v779, %v775
    %v1124 = vpack.c.b16 %v780, %v776
    %v1125 = vpack.c.b16 %v781, %v777
    %v1126 = vpack.c.b16 %v782, %v778
    %v1127 = vpack.c.b16 %v787, %v783
    %v1128 = vpack.c.b16 %v788, %v784
    %v1129 = vpack.c.b16 %v789, %v785
    %v1130 = vpack.c.b16 %v790, %v786
    %v1131 = vpack.c.b16 %v795, %v791
    %v1132 = vpack.c.b16 %v796, %v792
    %v1133 = vpack.c.b16 %v797, %v793
    %v1134 = vpack.c.b16 %v798, %v794
    %v1135 = vpack.c.b16 %v803, %v799
    %v1136 = vpack.c.b16 %v804, %v800
    %v1137 = vpack.c.b16 %v805, %v801
    %v1138 = vpack.c.b16 %v806, %v802
    %v1139 = vpack.c.b16 %v811, %v807
    %v1140 = vpack.c.b16 %v812, %v808
    %v1141 = vpack.c.b16 %v813, %v809
    %v1142 = vpack.c.b16 %v814, %v810
    %v1143 = vpack.c.b16 %v819, %v815
    %v1144 = vpack.c.b16 %v820, %v816
    %v1145 = vpack.c.b16 %v821, %v817
    %v1146 = vpack.c.b16 %v822, %v818
    %v1147 = vpack.c.b16 %v827, %v823
    %v1148 = vpack.c.b16 %v828, %v824
    %v1149 = vpack.c.b16 %v829, %v825
    %v1150 = vpack.c.b16 %v830, %v826
    %v1151 = vpack.c.b16 %v835, %v831
    %v1152 = vpack.c.b16 %v836, %v832
    %v1153 = vpack.c.b16 %v837, %v833
    %v1154 = vpack.c.b16 %v838, %v834
    %v1155 = vpack.c.b16 %v843, %v839
    %v1156 = vpack.c.b16 %v844, %v840
    %v1157 = vpack.c.b16 %v845, %v841
    %v1158 = vpack.c.b16 %v846, %v842
    %v1159 = vpack.c.b16 %v851, %v847
    %v1160 = vpack.c.b16 %v852, %v848
    %v1161 = vpack.c.b16 %v853, %v849
    %v1162 = vpack.c.b16 %v854, %v850
    %v1163 = vpack.c.b16 %v859, %v855
    %v1164 = vpack.c.b16 %v860, %v856
    %v1165 = vpack.c.b16 %v861, %v857
    %v1166 = vpack.c.b16 %v862, %v858
    %v1167 = vpack.c.b16 %v867, %v863
    %v1168 = vpack.c.b16 %v868, %v864
    %v1169 = vpack.c.b16 %v869, %v865
    %v1170 = vpack.c.b16 %v870, %v866
    %v1171 = vpack.c.b16 %v875, %v871
    %v1172 = vpack.c.b16 %v876, %v872
    %v1173 = vpack.c.b16 %v877, %v873
    %v1174 = vpack.c.b16 %v878, %v874
    %v1175 = vpack.c.b16 %v883, %v879
    %v1176 = vpack.c.b16 %v884, %v880
    %v1177 = vpack.c.b16 %v885, %v881
    %v1178 = vpack.c.b16 %v886, %v882
    %v1179 = vpack.c.b16 %v891, %v887
    %v1180 = vpack.c.b16 %v892, %v888
    %v1181 = vpack.c.b16 %v893, %v889
    %v1182 = vpack.c.b16 %v894, %v890
    %v1183 = vpack.c.b16 %v899, %v895
    %v1184 = vpack.c.b16 %v900, %v896
    %v1185 = vpack.c.b16 %v901, %v897
    %v1186 = vpack.c.b16 %v902, %v898
    %v1187 = vpack.c.b16 %v907, %v903
    %v1188 = vpack.c.b16 %v908, %v904
    %v1189 = vpack.c.b16 %v909, %v905
    %v1190 = vpack.c.b16 %v910, %v906
    %v1191 = vpack.c.b16 %v915, %v911
    %v1192 = vpack.c.b16 %v916, %v912
    %v1193 = vpack.c.b16 %v917, %v913
    %v1194 = vpack.c.b16 %v918, %v914
    %v1195 = vpack.c.b16 %v923, %v919
    %v1196 = vpack.c.b16 %v924, %v920
    %v1197 = vpack.c.b16 %v925, %v921
    %v1198 = vpack.c.b16 %v926, %v922
    %v1199 = vpack.c.b16 %v931, %v927
    %v1200 = vpack.c.b16 %v932, %v928
    %v1201 = vpack.c.b16 %v933, %v929
    %v1202 = vpack.c.b16 %v934, %v930
    %v1203 = vpack.c.b16 %v939, %v935
    %v1204 = vpack.c.b16 %v940, %v936
    %v1205 = vpack.c.b16 %v941, %v937
    %v1206 = vpack.c.b16 %v942, %v938
    %v1207 = vpack.c.b16 %v947, %v943
    %v1208 = vpack.c.b16 %v948, %v944
    %v1209 = vpack.c.b16 %v949, %v945
    %v1210 = vpack.c.b16 %v950, %v946
    %v1211 = vpack.c.b16 %v955, %v951
    %v1212 = vpack.c.b16 %v956, %v952
    %v1213 = vpack.c.b16 %v957, %v953
    %v1214 = vpack.c.b16 %v958, %v954
    %v1215 = vpack.c.b16 %v963, %v959
    %v1216 = vpack.c.b16 %v964, %v960
    %v1217 = vpack.c.b16 %v965, %v961
    %v1218 = vpack.c.b16 %v966, %v962
    %v1219 = vpack.c.b16 %v971, %v967
    %v1220 = vpack.c.b16 %v972, %v968
    %v1221 = vpack.c.b16 %v973, %v969
    %v1222 = vpack.c.b16 %v974, %v970
    %v1223 = vpack.c.b16 %v979, %v975
    %v1224 = vpack.c.b16 %v980, %v976
    %v1225 = vpack.c.b16 %v981, %v977
    %v1226 = vpack.c.b16 %v982, %v978
    %v1227 = vpack.c.b16 %v987, %v983
    %v1228 = vpack.c.b16 %v988, %v984
    %v1229 = vpack.c.b16 %v989, %v985
    %v1230 = vpack.c.b16 %v990, %v986
    %v1231 = vpack.c.b16 %v995, %v991
    %v1232 = vpack.c.b16 %v996, %v992
    %v1233 = vpack.c.b16 %v997, %v993
    %v1234 = vpack.c.b16 %v998, %v994
    %v1235 = vpack.c.b16 %v1003, %v999
    %v1236 = vpack.c.b16 %v1004, %v1000
    %v1237 = vpack.c.b16 %v1005, %v1001
    %v1238 = vpack.c.b16 %v1006, %v1002
    %v1239 = vpack.c.b16 %v1011, %v1007
    %v1240 = vpack.c.b16 %v1012, %v1008
    %v1241 = vpack.c.b16 %v1013, %v1009
    %v1242 = vpack.c.b16 %v1014, %v1010
    %v1243 = vpack.c.b16 %v1019, %v1015
    %v1244 = vpack.c.b16 %v1020, %v1016
    %v1245 = vpack.c.b16 %v1021, %v1017
    %v1246 = vpack.c.b16 %v1022, %v1018
    %1471 = vmatprep.subr.bf16.mxu0 %v1052
    %1472 = vmatpush1.bf16.msra.mxu0 %v1051
    %1473 = vmatprep.subr.bf16.mxu0 %v1048
    %1474 = vmatpush1.bf16.msra.mxu0 %v1047
    %1475 = vmatprep.subr.bf16.mxu0 %v1044
    %1476 = vmatpush1.bf16.msra.mxu0 %v1043
    %1477 = vmatprep.subr.bf16.mxu0 %v1040
    %1478 = vmatpush1.bf16.msra.mxu0 %v1039
    %1479 = vmatprep.subr.bf16.mxu0 %v1036
    %1480 = vmatpush1.bf16.msra.mxu0 %v1035
    %1481 = vmatprep.subr.bf16.mxu0 %v1032
    %1482 = vmatpush1.bf16.msra.mxu0 %v1031
    %1483 = vmatprep.subr.bf16.mxu0 %v1028
    %1484 = vmatpush1.bf16.msra.mxu0 %v1027
    %1485 = vmatprep.subr.bf16.mxu0 %v1024
    %1486 = vmatpush1.bf16.msra.mxu0 %v1023
    %1487 = vmatprep.subr.bf16.mxu0 %v1084
    %1488 = vmatpush2.bf16.msra.mxu0 %v1083
    %1489 = vmatprep.subr.bf16.mxu0 %v1080
    %1490 = vmatpush2.bf16.msra.mxu0 %v1079
    %1491 = vmatprep.subr.bf16.mxu0 %v1076
    %1492 = vmatpush2.bf16.msra.mxu0 %v1075
    %1493 = vmatprep.subr.bf16.mxu0 %v1072
    %1494 = vmatpush2.bf16.msra.mxu0 %v1071
    %1495 = vmatprep.subr.bf16.mxu0 %v1068
    %1496 = vmatpush2.bf16.msra.mxu0 %v1067
    %1497 = vmatprep.subr.bf16.mxu0 %v1064
    %1498 = vmatpush2.bf16.msra.mxu0 %v1063
    %1499 = vmatprep.subr.bf16.mxu0 %v1060
    %1500 = vmatpush2.bf16.msra.mxu0 %v1059
    %1501 = vmatprep.subr.bf16.mxu0 %v1056
    %1502 = vmatpush2.bf16.msra.mxu0 %v1055
    %1503 = vmatprep.mubr.bf16.mxu0 %v338
    %1504 = vmatmul.mubr.bf16.gmra.mxu0 %v337
    %v1505 = vpop.f32.mrf.mxu0
    %v1506 = vadd.f32 %v309, %v1505
    %v1507 = vpop.f32.mrf.mxu0
    %v1508 = vadd.f32 %v313, %v1507
    %v1509 = vpop.f32.mrf.mxu0
    %v1510 = vpop.f32.mrf.mxu0
    %1511 = vdwg.mxu0
    %1512 = vmatprep.subr.bf16.mxu0 %v1116
    %1513 = vmatpush1.bf16.msra.mxu0 %v1115
    %1514 = vmatprep.subr.bf16.mxu0 %v1112
    %1515 = vmatpush1.bf16.msra.mxu0 %v1111
    %1516 = vmatprep.subr.bf16.mxu0 %v1108
    %1517 = vmatpush1.bf16.msra.mxu0 %v1107
    %1518 = vmatprep.subr.bf16.mxu0 %v1104
    %1519 = vmatpush1.bf16.msra.mxu0 %v1103
    %1520 = vmatprep.subr.bf16.mxu0 %v1100
    %1521 = vmatpush1.bf16.msra.mxu0 %v1099
    %1522 = vmatprep.subr.bf16.mxu0 %v1096
    %1523 = vmatpush1.bf16.msra.mxu0 %v1095
    %1524 = vmatprep.subr.bf16.mxu0 %v1092
    %1525 = vmatpush1.bf16.msra.mxu0 %v1091
    %1526 = vmatprep.subr.bf16.mxu0 %v1088
    %1527 = vmatpush1.bf16.msra.mxu0 %v1087
    %1528 = vmatprep.subr.bf16.mxu0 %v1148
    %1529 = vmatpush2.bf16.msra.mxu0 %v1147
    %1530 = vmatprep.subr.bf16.mxu0 %v1144
    %1531 = vmatpush2.bf16.msra.mxu0 %v1143
    %1532 = vmatprep.subr.bf16.mxu0 %v1140
    %1533 = vmatpush2.bf16.msra.mxu0 %v1139
    %1534 = vmatprep.subr.bf16.mxu0 %v1136
    %1535 = vmatpush2.bf16.msra.mxu0 %v1135
    %1536 = vmatprep.subr.bf16.mxu0 %v1132
    %1537 = vmatpush2.bf16.msra.mxu0 %v1131
    %1538 = vmatprep.subr.bf16.mxu0 %v1128
    %1539 = vmatpush2.bf16.msra.mxu0 %v1127
    %1540 = vmatprep.subr.bf16.mxu0 %v1124
    %1541 = vmatpush2.bf16.msra.mxu0 %v1123
    %1542 = vmatprep.subr.bf16.mxu0 %v1120
    %1543 = vmatpush2.bf16.msra.mxu0 %v1119
    %1544 = vmatprep.mubr.bf16.mxu0 %v340
    %1545 = vmatmul.mubr.bf16.gmra.mxu0 %v339
    %v1546 = vpop.f32.mrf.mxu0
    %v1547 = vadd.f32 %v1506, %v1546
    %v1548 = vpop.f32.mrf.mxu0
    %v1549 = vadd.f32 %v1508, %v1548
    %v1550 = vpop.f32.mrf.mxu0
    %v1551 = vpop.f32.mrf.mxu0
    %1552 = vdwg.mxu0
    %1553 = vmatprep.subr.bf16.mxu0 %v1180
    %1554 = vmatpush1.bf16.msra.mxu0 %v1179
    %1555 = vmatprep.subr.bf16.mxu0 %v1176
    %1556 = vmatpush1.bf16.msra.mxu0 %v1175
    %1557 = vmatprep.subr.bf16.mxu0 %v1172
    %1558 = vmatpush1.bf16.msra.mxu0 %v1171
    %1559 = vmatprep.subr.bf16.mxu0 %v1168
    %1560 = vmatpush1.bf16.msra.mxu0 %v1167
    %1561 = vmatprep.subr.bf16.mxu0 %v1164
    %1562 = vmatpush1.bf16.msra.mxu0 %v1163
    %1563 = vmatprep.subr.bf16.mxu0 %v1160
    %1564 = vmatpush1.bf16.msra.mxu0 %v1159
    %1565 = vmatprep.subr.bf16.mxu0 %v1156
    %1566 = vmatpush1.bf16.msra.mxu0 %v1155
    %1567 = vmatprep.subr.bf16.mxu0 %v1152
    %1568 = vmatpush1.bf16.msra.mxu0 %v1151
    %1569 = vmatprep.subr.bf16.mxu0 %v1212
    %1570 = vmatpush2.bf16.msra.mxu0 %v1211
    %1571 = vmatprep.subr.bf16.mxu0 %v1208
    %1572 = vmatpush2.bf16.msra.mxu0 %v1207
    %1573 = vmatprep.subr.bf16.mxu0 %v1204
    %1574 = vmatpush2.bf16.msra.mxu0 %v1203
    %1575 = vmatprep.subr.bf16.mxu0 %v1200
    %1576 = vmatpush2.bf16.msra.mxu0 %v1199
    %1577 = vmatprep.subr.bf16.mxu0 %v1196
    %1578 = vmatpush2.bf16.msra.mxu0 %v1195
    %1579 = vmatprep.subr.bf16.mxu0 %v1192
    %1580 = vmatpush2.bf16.msra.mxu0 %v1191
    %1581 = vmatprep.subr.bf16.mxu0 %v1188
    %1582 = vmatpush2.bf16.msra.mxu0 %v1187
    %1583 = vmatprep.subr.bf16.mxu0 %v1184
    %1584 = vmatpush2.bf16.msra.mxu0 %v1183
    %1585 = vmatprep.mubr.bf16.mxu0 %v342
    %1586 = vmatmul.mubr.bf16.gmra.mxu0 %v341
    %v1587 = vpop.f32.mrf.mxu0
    %v1588 = vadd.f32 %v1547, %v1587
    %v1589 = vpop.f32.mrf.mxu0
    %v1590 = vadd.f32 %v1549, %v1589
    %v1591 = vpop.f32.mrf.mxu0
    %v1592 = vpop.f32.mrf.mxu0
    %1593 = vdwg.mxu0
    %1594 = vmatprep.subr.bf16.mxu0 %v1244
    %1595 = vmatpush1.bf16.msra.mxu0 %v1243
    %1596 = vmatprep.subr.bf16.mxu0 %v1240
    %1597 = vmatpush1.bf16.msra.mxu0 %v1239
    %1598 = vmatprep.subr.bf16.mxu0 %v1236
    %1599 = vmatpush1.bf16.msra.mxu0 %v1235
    %1600 = vmatprep.subr.bf16.mxu0 %v1232
    %1601 = vmatpush1.bf16.msra.mxu0 %v1231
    %1602 = vmatprep.subr.bf16.mxu0 %v1228
    %1603 = vmatpush1.bf16.msra.mxu0 %v1227
    %1604 = vmatprep.subr.bf16.mxu0 %v1224
    %1605 = vmatpush1.bf16.msra.mxu0 %v1223
    %1606 = vmatprep.subr.bf16.mxu0 %v1220
    %1607 = vmatpush1.bf16.msra.mxu0 %v1219
    %1608 = vmatprep.subr.bf16.mxu0 %v1216
    %1609 = vmatpush1.bf16.msra.mxu0 %v1215
    %1610 = vmatprep.subr.bf16.mxu0 0
    %1611 = vmatpush2.bf16.msra.mxu0 0
    %1612 = vmatprep.subr.bf16.mxu0 0
    %1613 = vmatpush2.bf16.msra.mxu0 0
    %1614 = vmatprep.subr.bf16.mxu0 0
    %1615 = vmatpush2.bf16.msra.mxu0 0
    %1616 = vmatprep.subr.bf16.mxu0 0
    %1617 = vmatpush2.bf16.msra.mxu0 0
    %1618 = vmatprep.subr.bf16.mxu0 0
    %1619 = vmatpush2.bf16.msra.mxu0 0
    %1620 = vmatprep.subr.bf16.mxu0 0
    %1621 = vmatpush2.bf16.msra.mxu0 0
    %1622 = vmatprep.subr.bf16.mxu0 0
    %1623 = vmatpush2.bf16.msra.mxu0 0
    %1624 = vmatprep.subr.bf16.mxu0 0
    %1625 = vmatpush2.bf16.msra.mxu0 0
    %1626 = vmatprep.mubr.bf16.mxu0 0
    %1627 = vmatmul.mubr.bf16.gmra.mxu0 %v343
    %v1628 = vpop.f32.mrf.mxu0
    %v1629 = vadd.f32 %v1588, %v1628
    %v1630 = vpop.f32.mrf.mxu0
    %v1631 = vadd.f32 %v1590, %v1630
    %v1632 = vpop.f32.mrf.mxu0
    %v1633 = vpop.f32.mrf.mxu0
    %1634 = vdwg.mxu0
    %1635 = vmatprep.subr.bf16.mxu0 %v1054
    %1636 = vmatpush1.bf16.msra.mxu0 %v1053
    %1637 = vmatprep.subr.bf16.mxu0 %v1050
    %1638 = vmatpush1.bf16.msra.mxu0 %v1049
    %1639 = vmatprep.subr.bf16.mxu0 %v1046
    %1640 = vmatpush1.bf16.msra.mxu0 %v1045
    %1641 = vmatprep.subr.bf16.mxu0 %v1042
    %1642 = vmatpush1.bf16.msra.mxu0 %v1041
    %1643 = vmatprep.subr.bf16.mxu0 %v1038
    %1644 = vmatpush1.bf16.msra.mxu0 %v1037
    %1645 = vmatprep.subr.bf16.mxu0 %v1034
    %1646 = vmatpush1.bf16.msra.mxu0 %v1033
    %1647 = vmatprep.subr.bf16.mxu0 %v1030
    %1648 = vmatpush1.bf16.msra.mxu0 %v1029
    %1649 = vmatprep.subr.bf16.mxu0 %v1026
    %1650 = vmatpush1.bf16.msra.mxu0 %v1025
    %1651 = vmatprep.subr.bf16.mxu0 %v1086
    %1652 = vmatpush2.bf16.msra.mxu0 %v1085
    %1653 = vmatprep.subr.bf16.mxu0 %v1082
    %1654 = vmatpush2.bf16.msra.mxu0 %v1081
    %1655 = vmatprep.subr.bf16.mxu0 %v1078
    %1656 = vmatpush2.bf16.msra.mxu0 %v1077
    %1657 = vmatprep.subr.bf16.mxu0 %v1074
    %1658 = vmatpush2.bf16.msra.mxu0 %v1073
    %1659 = vmatprep.subr.bf16.mxu0 %v1070
    %1660 = vmatpush2.bf16.msra.mxu0 %v1069
    %1661 = vmatprep.subr.bf16.mxu0 %v1066
    %1662 = vmatpush2.bf16.msra.mxu0 %v1065
    %1663 = vmatprep.subr.bf16.mxu0 %v1062
    %1664 = vmatpush2.bf16.msra.mxu0 %v1061
    %1665 = vmatprep.subr.bf16.mxu0 %v1058
    %1666 = vmatpush2.bf16.msra.mxu0 %v1057
    %1667 = vmatprep.mubr.bf16.mxu0 %v338
    %1668 = vmatmul.mubr.bf16.gmra.mxu0 %v337
    %v1669 = vpop.f32.mrf.mxu0
    %v1670 = vadd.f32 %v317, %v1669
    %v1671 = vpop.f32.mrf.mxu0
    %v1672 = vadd.f32 %v321, %v1671
    %v1673 = vpop.f32.mrf.mxu0
    %v1674 = vpop.f32.mrf.mxu0
    %1675 = vdwg.mxu0
    %1676 = vmatprep.subr.bf16.mxu0 %v1118
    %1677 = vmatpush1.bf16.msra.mxu0 %v1117
    %1678 = vmatprep.subr.bf16.mxu0 %v1114
    %1679 = vmatpush1.bf16.msra.mxu0 %v1113
    %1680 = vmatprep.subr.bf16.mxu0 %v1110
    %1681 = vmatpush1.bf16.msra.mxu0 %v1109
    %1682 = vmatprep.subr.bf16.mxu0 %v1106
    %1683 = vmatpush1.bf16.msra.mxu0 %v1105
    %1684 = vmatprep.subr.bf16.mxu0 %v1102
    %1685 = vmatpush1.bf16.msra.mxu0 %v1101
    %1686 = vmatprep.subr.bf16.mxu0 %v1098
    %1687 = vmatpush1.bf16.msra.mxu0 %v1097
    %1688 = vmatprep.subr.bf16.mxu0 %v1094
    %1689 = vmatpush1.bf16.msra.mxu0 %v1093
    %1690 = vmatprep.subr.bf16.mxu0 %v1090
    %1691 = vmatpush1.bf16.msra.mxu0 %v1089
    %1692 = vmatprep.subr.bf16.mxu0 %v1150
    %1693 = vmatpush2.bf16.msra.mxu0 %v1149
    %1694 = vmatprep.subr.bf16.mxu0 %v1146
    %1695 = vmatpush2.bf16.msra.mxu0 %v1145
    %1696 = vmatprep.subr.bf16.mxu0 %v1142
    %1697 = vmatpush2.bf16.msra.mxu0 %v1141
    %1698 = vmatprep.subr.bf16.mxu0 %v1138
    %1699 = vmatpush2.bf16.msra.mxu0 %v1137
    %1700 = vmatprep.subr.bf16.mxu0 %v1134
    %1701 = vmatpush2.bf16.msra.mxu0 %v1133
    %1702 = vmatprep.subr.bf16.mxu0 %v1130
    %1703 = vmatpush2.bf16.msra.mxu0 %v1129
    %1704 = vmatprep.subr.bf16.mxu0 %v1126
    %1705 = vmatpush2.bf16.msra.mxu0 %v1125
    %1706 = vmatprep.subr.bf16.mxu0 %v1122
    %1707 = vmatpush2.bf16.msra.mxu0 %v1121
    %1708 = vmatprep.mubr.bf16.mxu0 %v340
    %1709 = vmatmul.mubr.bf16.gmra.mxu0 %v339
    %v1710 = vpop.f32.mrf.mxu0
    %v1711 = vadd.f32 %v1670, %v1710
    %v1712 = vpop.f32.mrf.mxu0
    %v1713 = vadd.f32 %v1672, %v1712
    %v1714 = vpop.f32.mrf.mxu0
    %v1715 = vpop.f32.mrf.mxu0
    %1716 = vdwg.mxu0
    %1717 = vmatprep.subr.bf16.mxu0 %v1182
    %1718 = vmatpush1.bf16.msra.mxu0 %v1181
    %1719 = vmatprep.subr.bf16.mxu0 %v1178
    %1720 = vmatpush1.bf16.msra.mxu0 %v1177
    %1721 = vmatprep.subr.bf16.mxu0 %v1174
    %1722 = vmatpush1.bf16.msra.mxu0 %v1173
    %1723 = vmatprep.subr.bf16.mxu0 %v1170
    %1724 = vmatpush1.bf16.msra.mxu0 %v1169
    %1725 = vmatprep.subr.bf16.mxu0 %v1166
    %1726 = vmatpush1.bf16.msra.mxu0 %v1165
    %1727 = vmatprep.subr.bf16.mxu0 %v1162
    %1728 = vmatpush1.bf16.msra.mxu0 %v1161
    %1729 = vmatprep.subr.bf16.mxu0 %v1158
    %1730 = vmatpush1.bf16.msra.mxu0 %v1157
    %1731 = vmatprep.subr.bf16.mxu0 %v1154
    %1732 = vmatpush1.bf16.msra.mxu0 %v1153
    %1733 = vmatprep.subr.bf16.mxu0 %v1214
    %1734 = vmatpush2.bf16.msra.mxu0 %v1213
    %1735 = vmatprep.subr.bf16.mxu0 %v1210
    %1736 = vmatpush2.bf16.msra.mxu0 %v1209
    %1737 = vmatprep.subr.bf16.mxu0 %v1206
    %1738 = vmatpush2.bf16.msra.mxu0 %v1205
    %1739 = vmatprep.subr.bf16.mxu0 %v1202
    %1740 = vmatpush2.bf16.msra.mxu0 %v1201
    %1741 = vmatprep.subr.bf16.mxu0 %v1198
    %1742 = vmatpush2.bf16.msra.mxu0 %v1197
    %1743 = vmatprep.subr.bf16.mxu0 %v1194
    %1744 = vmatpush2.bf16.msra.mxu0 %v1193
    %1745 = vmatprep.subr.bf16.mxu0 %v1190
    %1746 = vmatpush2.bf16.msra.mxu0 %v1189
    %1747 = vmatprep.subr.bf16.mxu0 %v1186
    %1748 = vmatpush2.bf16.msra.mxu0 %v1185
    %1749 = vmatprep.mubr.bf16.mxu0 %v342
    %1750 = vmatmul.mubr.bf16.gmra.mxu0 %v341
    %v1751 = vpop.f32.mrf.mxu0
    %v1752 = vadd.f32 %v1711, %v1751
    %v1753 = vpop.f32.mrf.mxu0
    %v1754 = vadd.f32 %v1713, %v1753
    %v1755 = vpop.f32.mrf.mxu0
    %v1756 = vpop.f32.mrf.mxu0
    %1757 = vdwg.mxu0
    %1758 = vmatprep.subr.bf16.mxu0 %v1246
    %1759 = vmatpush1.bf16.msra.mxu0 %v1245
    %1760 = vmatprep.subr.bf16.mxu0 %v1242
    %1761 = vmatpush1.bf16.msra.mxu0 %v1241
    %1762 = vmatprep.subr.bf16.mxu0 %v1238
    %1763 = vmatpush1.bf16.msra.mxu0 %v1237
    %1764 = vmatprep.subr.bf16.mxu0 %v1234
    %1765 = vmatpush1.bf16.msra.mxu0 %v1233
    %1766 = vmatprep.subr.bf16.mxu0 %v1230
    %1767 = vmatpush1.bf16.msra.mxu0 %v1229
    %1768 = vmatprep.subr.bf16.mxu0 %v1226
    %1769 = vmatpush1.bf16.msra.mxu0 %v1225
    %1770 = vmatprep.subr.bf16.mxu0 %v1222
    %1771 = vmatpush1.bf16.msra.mxu0 %v1221
    %1772 = vmatprep.subr.bf16.mxu0 %v1218
    %1773 = vmatpush1.bf16.msra.mxu0 %v1217
    %1774 = vmatprep.subr.bf16.mxu0 0
    %1775 = vmatpush2.bf16.msra.mxu0 0
    %1776 = vmatprep.subr.bf16.mxu0 0
    %1777 = vmatpush2.bf16.msra.mxu0 0
    %1778 = vmatprep.subr.bf16.mxu0 0
    %1779 = vmatpush2.bf16.msra.mxu0 0
    %1780 = vmatprep.subr.bf16.mxu0 0
    %1781 = vmatpush2.bf16.msra.mxu0 0
    %1782 = vmatprep.subr.bf16.mxu0 0
    %1783 = vmatpush2.bf16.msra.mxu0 0
    %1784 = vmatprep.subr.bf16.mxu0 0
    %1785 = vmatpush2.bf16.msra.mxu0 0
    %1786 = vmatprep.subr.bf16.mxu0 0
    %1787 = vmatpush2.bf16.msra.mxu0 0
    %1788 = vmatprep.subr.bf16.mxu0 0
    %1789 = vmatpush2.bf16.msra.mxu0 0
    %1790 = vmatprep.mubr.bf16.mxu0 0
    %1791 = vmatmul.mubr.bf16.gmra.mxu0 %v343
    %v1792 = vpop.f32.mrf.mxu0
    %v1793 = vadd.f32 %v1752, %v1792
    %v1794 = vpop.f32.mrf.mxu0
    %v1795 = vadd.f32 %v1754, %v1794
    %v1796 = vpop.f32.mrf.mxu0
    %v1797 = vpop.f32.mrf.mxu0
    %1798 = vdwg.mxu0
    %vm1799 = vcmp.gt.f32.partialorder %v1629, 0.0
    %vm1800 = vcmp.gt.f32.partialorder %v1631, 0.0
    %vm1801 = vcmp.gt.f32.partialorder %v1793, 0.0
    %vm1802 = vcmp.gt.f32.partialorder %v1795, 0.0
    %v1803 = vmul.f32 %v1629, 0.2
    %v1804 = vmul.f32 %v1631, 0.2
    %v1805 = vmul.f32 %v1793, 0.2
    %v1806 = vmul.f32 %v1795, 0.2
    %v1807 = vsel %vm1799, %v1629, %v1803
    %v1808 = vsel %vm1800, %v1631, %v1804
    %v1809 = vsel %vm1801, %v1793, %v1805
    %v1810 = vsel %vm1802, %v1795, %v1806
    %v1811 = vpack.c.bf16 %v1807, %v1807
    %v1812 = vpack.c.bf16 %v1808, %v1808
    %v1813 = vpack.c.bf16 %v1809, %v1809
    %v1814 = vpack.c.bf16 %v1810, %v1810
    %v1815 = vld [vmem:[#allocation5] sm:$0xff]
    %v1816 = vld [vmem:[#allocation5 + $0x8] sm:$0xff]
    %v1817 = vld [vmem:[#allocation5 + $0x10] sm:$0xff]
    %v1818 = vld [vmem:[#allocation5 + $0x18] sm:$0xff]
    %v1819 = vld [vmem:[#allocation5 + $0x20] sm:$0xff]
    %v1820 = vld [vmem:[#allocation5 + $0x28] sm:$0xff]
    %v1821 = vld [vmem:[#allocation5 + $0x30] sm:$0xff]
    %v1822 = vld [vmem:[#allocation5 + $0x38] sm:$0xff]
    %v1823 = vld [vmem:[#allocation5 + $0x40] sm:$0xff]
    %v1824 = vld [vmem:[#allocation5 + $0x48] sm:$0xff]
    %v1825 = vld [vmem:[#allocation5 + $0x50] sm:$0xff]
    %v1826 = vld [vmem:[#allocation5 + $0x58] sm:$0xff]
    %v1827 = vld [vmem:[#allocation5 + $0x60] sm:$0xff]
    %v1828 = vld [vmem:[#allocation5 + $0x68] sm:$0xff]
    %v1829 = vld [vmem:[#allocation5 + $0x70] sm:$0xff]
    %v1830 = vld [vmem:[#allocation5 + $0x78] sm:$0xff]
    %v1831 = vld [vmem:[#allocation5 + $0x80] sm:$0xff]
    %v1832 = vld [vmem:[#allocation5 + $0x88] sm:$0xff]
    %v1833 = vld [vmem:[#allocation5 + $0x90] sm:$0xff]
    %v1834 = vld [vmem:[#allocation5 + $0x98] sm:$0xff]
    %v1835 = vld [vmem:[#allocation5 + $0xa0] sm:$0xff]
    %v1836 = vld [vmem:[#allocation5 + $0xa8] sm:$0xff]
    %v1837 = vld [vmem:[#allocation5 + $0xb0] sm:$0xff]
    %v1838 = vld [vmem:[#allocation5 + $0xb8] sm:$0xff]
    %v1839 = vld [vmem:[#allocation5 + $0xc0] sm:$0xff]
    %v1840 = vld [vmem:[#allocation5 + $0xc8] sm:$0xff]
    %v1841 = vld [vmem:[#allocation5 + $0xd0] sm:$0xff]
    %v1842 = vld [vmem:[#allocation5 + $0xd8] sm:$0xff]
    %v1843 = vld [vmem:[#allocation5 + $0xe0] sm:$0xff]
    %v1844 = vld [vmem:[#allocation5 + $0xe8] sm:$0xff]
    %v1845 = vld [vmem:[#allocation5 + $0xf0] sm:$0xff]
    %v1846 = vld [vmem:[#allocation5 + $0xf8] sm:$0xff]
    %v1847 = vld [vmem:[#allocation5 + $0x100] sm:$0xff]
    %v1848 = vld [vmem:[#allocation5 + $0x108] sm:$0xff]
    %v1849 = vld [vmem:[#allocation5 + $0x110] sm:$0xff]
    %v1850 = vld [vmem:[#allocation5 + $0x118] sm:$0xff]
    %v1851 = vld [vmem:[#allocation5 + $0x120] sm:$0xff]
    %v1852 = vld [vmem:[#allocation5 + $0x128] sm:$0xff]
    %v1853 = vld [vmem:[#allocation5 + $0x130] sm:$0xff]
    %v1854 = vld [vmem:[#allocation5 + $0x138] sm:$0xff]
    %v1855 = vld [vmem:[#allocation5 + $0x140] sm:$0xff]
    %v1856 = vld [vmem:[#allocation5 + $0x148] sm:$0xff]
    %v1857 = vld [vmem:[#allocation5 + $0x150] sm:$0xff]
    %v1858 = vld [vmem:[#allocation5 + $0x158] sm:$0xff]
    %v1859 = vld [vmem:[#allocation5 + $0x160] sm:$0xff]
    %v1860 = vld [vmem:[#allocation5 + $0x168] sm:$0xff]
    %v1861 = vld [vmem:[#allocation5 + $0x170] sm:$0xff]
    %v1862 = vld [vmem:[#allocation5 + $0x178] sm:$0xff]
    %v1863 = vld [vmem:[#allocation5 + $0x180] sm:$0xff]
    %v1864 = vld [vmem:[#allocation5 + $0x188] sm:$0xff]
    %v1865 = vld [vmem:[#allocation5 + $0x190] sm:$0xff]
    %v1866 = vld [vmem:[#allocation5 + $0x198] sm:$0xff]
    %v1867 = vld [vmem:[#allocation5 + $0x1a0] sm:$0xff]
    %v1868 = vld [vmem:[#allocation5 + $0x1a8] sm:$0xff]
    %v1869 = vld [vmem:[#allocation5 + $0x1b0] sm:$0xff]
    %v1870 = vld [vmem:[#allocation5 + $0x1b8] sm:$0xff]
    %v1871 = vld [vmem:[#allocation5 + $0x1c0] sm:$0xff]
    %v1872 = vld [vmem:[#allocation5 + $0x1c8] sm:$0xff]
    %v1873 = vld [vmem:[#allocation5 + $0x1d0] sm:$0xff]
    %v1874 = vld [vmem:[#allocation5 + $0x1d8] sm:$0xff]
    %v1875 = vld [vmem:[#allocation5 + $0x1e0] sm:$0xff]
    %v1876 = vld [vmem:[#allocation5 + $0x1e8] sm:$0xff]
    %v1877 = vld [vmem:[#allocation5 + $0x1f0] sm:$0xff]
    %v1878 = vld [vmem:[#allocation5 + $0x1f8] sm:$0xff]
    %v1879 = vld [vmem:[%s4] sm:$0x3]
    %v1881 = vlaneseq
    %v1882 = vshrl.u32 %v1881, 7
    %v1883 = vsub.s32 0, %v1882
    %v1884 = vrot.slane %v1879, %v1883
    %v1885 = vlaneseq
    %v1886 = vshrl.u32 %v1885, 7
    %v1887 = vsub.s32 1, %v1886
    %v1888 = vrot.slane %v1879, %v1887
    %v1955 = vunpack.c.l.b16 %v1815
    %v1956 = vunpack.c.h.b16 %v1815
    %v1957 = vunpack.c.l.b16 %v1816
    %v1958 = vunpack.c.h.b16 %v1816
    %v1959 = vunpack.c.l.b16 %v1817
    %v1960 = vunpack.c.h.b16 %v1817
    %v1961 = vunpack.c.l.b16 %v1818
    %v1962 = vunpack.c.h.b16 %v1818
    %v1963 = vunpack.c.l.b16 %v1819
    %v1964 = vunpack.c.h.b16 %v1819
    %v1965 = vunpack.c.l.b16 %v1820
    %v1966 = vunpack.c.h.b16 %v1820
    %v1967 = vunpack.c.l.b16 %v1821
    %v1968 = vunpack.c.h.b16 %v1821
    %v1969 = vunpack.c.l.b16 %v1822
    %v1970 = vunpack.c.h.b16 %v1822
    %v1971 = vunpack.c.l.b16 %v1823
    %v1972 = vunpack.c.h.b16 %v1823
    %v1973 = vunpack.c.l.b16 %v1824
    %v1974 = vunpack.c.h.b16 %v1824
    %v1975 = vunpack.c.l.b16 %v1825
    %v1976 = vunpack.c.h.b16 %v1825
    %v1977 = vunpack.c.l.b16 %v1826
    %v1978 = vunpack.c.h.b16 %v1826
    %v1979 = vunpack.c.l.b16 %v1827
    %v1980 = vunpack.c.h.b16 %v1827
    %v1981 = vunpack.c.l.b16 %v1828
    %v1982 = vunpack.c.h.b16 %v1828
    %v1983 = vunpack.c.l.b16 %v1829
    %v1984 = vunpack.c.h.b16 %v1829
    %v1985 = vunpack.c.l.b16 %v1830
    %v1986 = vunpack.c.h.b16 %v1830
    %v1987 = vunpack.c.l.b16 %v1831
    %v1988 = vunpack.c.h.b16 %v1831
    %v1989 = vunpack.c.l.b16 %v1832
    %v1990 = vunpack.c.h.b16 %v1832
    %v1991 = vunpack.c.l.b16 %v1833
    %v1992 = vunpack.c.h.b16 %v1833
    %v1993 = vunpack.c.l.b16 %v1834
    %v1994 = vunpack.c.h.b16 %v1834
    %v1995 = vunpack.c.l.b16 %v1835
    %v1996 = vunpack.c.h.b16 %v1835
    %v1997 = vunpack.c.l.b16 %v1836
    %v1998 = vunpack.c.h.b16 %v1836
    %v1999 = vunpack.c.l.b16 %v1837
    %v2000 = vunpack.c.h.b16 %v1837
    %v2001 = vunpack.c.l.b16 %v1838
    %v2002 = vunpack.c.h.b16 %v1838
    %v2003 = vunpack.c.l.b16 %v1839
    %v2004 = vunpack.c.h.b16 %v1839
    %v2005 = vunpack.c.l.b16 %v1840
    %v2006 = vunpack.c.h.b16 %v1840
    %v2007 = vunpack.c.l.b16 %v1841
    %v2008 = vunpack.c.h.b16 %v1841
    %v2009 = vunpack.c.l.b16 %v1842
    %v2010 = vunpack.c.h.b16 %v1842
    %v2011 = vunpack.c.l.b16 %v1843
    %v2012 = vunpack.c.h.b16 %v1843
    %v2013 = vunpack.c.l.b16 %v1844
    %v2014 = vunpack.c.h.b16 %v1844
    %v2015 = vunpack.c.l.b16 %v1845
    %v2016 = vunpack.c.h.b16 %v1845
    %v2017 = vunpack.c.l.b16 %v1846
    %v2018 = vunpack.c.h.b16 %v1846
    %v2019 = vunpack.c.l.b16 %v1847
    %v2020 = vunpack.c.h.b16 %v1847
    %v2021 = vunpack.c.l.b16 %v1848
    %v2022 = vunpack.c.h.b16 %v1848
    %v2023 = vunpack.c.l.b16 %v1849
    %v2024 = vunpack.c.h.b16 %v1849
    %v2025 = vunpack.c.l.b16 %v1850
    %v2026 = vunpack.c.h.b16 %v1850
    %v2027 = vunpack.c.l.b16 %v1851
    %v2028 = vunpack.c.h.b16 %v1851
    %v2029 = vunpack.c.l.b16 %v1852
    %v2030 = vunpack.c.h.b16 %v1852
    %v2031 = vunpack.c.l.b16 %v1853
    %v2032 = vunpack.c.h.b16 %v1853
    %v2033 = vunpack.c.l.b16 %v1854
    %v2034 = vunpack.c.h.b16 %v1854
    %v2035 = vunpack.c.l.b16 %v1855
    %v2036 = vunpack.c.h.b16 %v1855
    %v2037 = vunpack.c.l.b16 %v1856
    %v2038 = vunpack.c.h.b16 %v1856
    %v2039 = vunpack.c.l.b16 %v1857
    %v2040 = vunpack.c.h.b16 %v1857
    %v2041 = vunpack.c.l.b16 %v1858
    %v2042 = vunpack.c.h.b16 %v1858
    %v2043 = vunpack.c.l.b16 %v1859
    %v2044 = vunpack.c.h.b16 %v1859
    %v2045 = vunpack.c.l.b16 %v1860
    %v2046 = vunpack.c.h.b16 %v1860
    %v2047 = vunpack.c.l.b16 %v1861
    %v2048 = vunpack.c.h.b16 %v1861
    %v2049 = vunpack.c.l.b16 %v1862
    %v2050 = vunpack.c.h.b16 %v1862
    %v2051 = vunpack.c.l.b16 %v1863
    %v2052 = vunpack.c.h.b16 %v1863
    %v2053 = vunpack.c.l.b16 %v1864
    %v2054 = vunpack.c.h.b16 %v1864
    %v2055 = vunpack.c.l.b16 %v1865
    %v2056 = vunpack.c.h.b16 %v1865
    %v2057 = vunpack.c.l.b16 %v1866
    %v2058 = vunpack.c.h.b16 %v1866
    %v2059 = vunpack.c.l.b16 %v1867
    %v2060 = vunpack.c.h.b16 %v1867
    %v2061 = vunpack.c.l.b16 %v1868
    %v2062 = vunpack.c.h.b16 %v1868
    %v2063 = vunpack.c.l.b16 %v1869
    %v2064 = vunpack.c.h.b16 %v1869
    %v2065 = vunpack.c.l.b16 %v1870
    %v2066 = vunpack.c.h.b16 %v1870
    %v2067 = vunpack.c.l.b16 %v1871
    %v2068 = vunpack.c.h.b16 %v1871
    %v2069 = vunpack.c.l.b16 %v1872
    %v2070 = vunpack.c.h.b16 %v1872
    %v2071 = vunpack.c.l.b16 %v1873
    %v2072 = vunpack.c.h.b16 %v1873
    %v2073 = vunpack.c.l.b16 %v1874
    %v2074 = vunpack.c.h.b16 %v1874
    %v2075 = vunpack.c.l.b16 %v1875
    %v2076 = vunpack.c.h.b16 %v1875
    %v2077 = vunpack.c.l.b16 %v1876
    %v2078 = vunpack.c.h.b16 %v1876
    %v2079 = vunpack.c.l.b16 %v1877
    %v2080 = vunpack.c.h.b16 %v1877
    %v2081 = vunpack.c.l.b16 %v1878
    %v2082 = vunpack.c.h.b16 %v1878
    %v2083 = vpack.c.b16 %v1957, %v1955
    %v2084 = vpack.c.b16 %v1958, %v1956
    %v2085 = vpack.c.b16 %v1961, %v1959
    %v2086 = vpack.c.b16 %v1962, %v1960
    %v2087 = vpack.c.b16 %v1965, %v1963
    %v2088 = vpack.c.b16 %v1966, %v1964
    %v2089 = vpack.c.b16 %v1969, %v1967
    %v2090 = vpack.c.b16 %v1970, %v1968
    %v2091 = vpack.c.b16 %v1973, %v1971
    %v2092 = vpack.c.b16 %v1974, %v1972
    %v2093 = vpack.c.b16 %v1977, %v1975
    %v2094 = vpack.c.b16 %v1978, %v1976
    %v2095 = vpack.c.b16 %v1981, %v1979
    %v2096 = vpack.c.b16 %v1982, %v1980
    %v2097 = vpack.c.b16 %v1985, %v1983
    %v2098 = vpack.c.b16 %v1986, %v1984
    %v2099 = vpack.c.b16 %v1989, %v1987
    %v2100 = vpack.c.b16 %v1990, %v1988
    %v2101 = vpack.c.b16 %v1993, %v1991
    %v2102 = vpack.c.b16 %v1994, %v1992
    %v2103 = vpack.c.b16 %v1997, %v1995
    %v2104 = vpack.c.b16 %v1998, %v1996
    %v2105 = vpack.c.b16 %v2001, %v1999
    %v2106 = vpack.c.b16 %v2002, %v2000
    %v2107 = vpack.c.b16 %v2005, %v2003
    %v2108 = vpack.c.b16 %v2006, %v2004
    %v2109 = vpack.c.b16 %v2009, %v2007
    %v2110 = vpack.c.b16 %v2010, %v2008
    %v2111 = vpack.c.b16 %v2013, %v2011
    %v2112 = vpack.c.b16 %v2014, %v2012
    %v2113 = vpack.c.b16 %v2017, %v2015
    %v2114 = vpack.c.b16 %v2018, %v2016
    %v2115 = vpack.c.b16 %v2021, %v2019
    %v2116 = vpack.c.b16 %v2022, %v2020
    %v2117 = vpack.c.b16 %v2025, %v2023
    %v2118 = vpack.c.b16 %v2026, %v2024
    %v2119 = vpack.c.b16 %v2029, %v2027
    %v2120 = vpack.c.b16 %v2030, %v2028
    %v2121 = vpack.c.b16 %v2033, %v2031
    %v2122 = vpack.c.b16 %v2034, %v2032
    %v2123 = vpack.c.b16 %v2037, %v2035
    %v2124 = vpack.c.b16 %v2038, %v2036
    %v2125 = vpack.c.b16 %v2041, %v2039
    %v2126 = vpack.c.b16 %v2042, %v2040
    %v2127 = vpack.c.b16 %v2045, %v2043
    %v2128 = vpack.c.b16 %v2046, %v2044
    %v2129 = vpack.c.b16 %v2049, %v2047
    %v2130 = vpack.c.b16 %v2050, %v2048
    %v2131 = vpack.c.b16 %v2053, %v2051
    %v2132 = vpack.c.b16 %v2054, %v2052
    %v2133 = vpack.c.b16 %v2057, %v2055
    %v2134 = vpack.c.b16 %v2058, %v2056
    %v2135 = vpack.c.b16 %v2061, %v2059
    %v2136 = vpack.c.b16 %v2062, %v2060
    %v2137 = vpack.c.b16 %v2065, %v2063
    %v2138 = vpack.c.b16 %v2066, %v2064
    %v2139 = vpack.c.b16 %v2069, %v2067
    %v2140 = vpack.c.b16 %v2070, %v2068
    %v2141 = vpack.c.b16 %v2073, %v2071
    %v2142 = vpack.c.b16 %v2074, %v2072
    %v2143 = vpack.c.b16 %v2077, %v2075
    %v2144 = vpack.c.b16 %v2078, %v2076
    %v2145 = vpack.c.b16 %v2081, %v2079
    %v2146 = vpack.c.b16 %v2082, %v2080
    %2211 = vmatprep.subr.bf16.mxu0 %v2098
    %2212 = vmatpush1.bf16.msra.mxu0 %v2097
    %2213 = vmatprep.subr.bf16.mxu0 %v2096
    %2214 = vmatpush1.bf16.msra.mxu0 %v2095
    %2215 = vmatprep.subr.bf16.mxu0 %v2094
    %2216 = vmatpush1.bf16.msra.mxu0 %v2093
    %2217 = vmatprep.subr.bf16.mxu0 %v2092
    %2218 = vmatpush1.bf16.msra.mxu0 %v2091
    %2219 = vmatprep.subr.bf16.mxu0 %v2090
    %2220 = vmatpush1.bf16.msra.mxu0 %v2089
    %2221 = vmatprep.subr.bf16.mxu0 %v2088
    %2222 = vmatpush1.bf16.msra.mxu0 %v2087
    %2223 = vmatprep.subr.bf16.mxu0 %v2086
    %2224 = vmatpush1.bf16.msra.mxu0 %v2085
    %2225 = vmatprep.subr.bf16.mxu0 %v2084
    %2226 = vmatpush1.bf16.msra.mxu0 %v2083
    %2227 = vmatprep.subr.bf16.mxu0 %v2114
    %2228 = vmatpush2.bf16.msra.mxu0 %v2113
    %2229 = vmatprep.subr.bf16.mxu0 %v2112
    %2230 = vmatpush2.bf16.msra.mxu0 %v2111
    %2231 = vmatprep.subr.bf16.mxu0 %v2110
    %2232 = vmatpush2.bf16.msra.mxu0 %v2109
    %2233 = vmatprep.subr.bf16.mxu0 %v2108
    %2234 = vmatpush2.bf16.msra.mxu0 %v2107
    %2235 = vmatprep.subr.bf16.mxu0 %v2106
    %2236 = vmatpush2.bf16.msra.mxu0 %v2105
    %2237 = vmatprep.subr.bf16.mxu0 %v2104
    %2238 = vmatpush2.bf16.msra.mxu0 %v2103
    %2239 = vmatprep.subr.bf16.mxu0 %v2102
    %2240 = vmatpush2.bf16.msra.mxu0 %v2101
    %2241 = vmatprep.subr.bf16.mxu0 %v2100
    %2242 = vmatpush2.bf16.msra.mxu0 %v2099
    %2243 = vmatprep.mubr.bf16.mxu0 %v1812
    %2244 = vmatmul.mubr.bf16.gmra.mxu0 %v1811
    %v2245 = vpop.f32.mrf.mxu0
    %v2246 = vadd.f32 %v1884, %v2245
    %v2247 = vpop.f32.mrf.mxu0
    %v2248 = vadd.f32 %v1888, %v2247
    %v2249 = vpop.f32.mrf.mxu0
    %v2250 = vpop.f32.mrf.mxu0
    %2251 = vdwg.mxu0
    %2252 = vmatprep.subr.bf16.mxu0 %v2130
    %2253 = vmatpush1.bf16.msra.mxu0 %v2129
    %2254 = vmatprep.subr.bf16.mxu0 %v2128
    %2255 = vmatpush1.bf16.msra.mxu0 %v2127
    %2256 = vmatprep.subr.bf16.mxu0 %v2126
    %2257 = vmatpush1.bf16.msra.mxu0 %v2125
    %2258 = vmatprep.subr.bf16.mxu0 %v2124
    %2259 = vmatpush1.bf16.msra.mxu0 %v2123
    %2260 = vmatprep.subr.bf16.mxu0 %v2122
    %2261 = vmatpush1.bf16.msra.mxu0 %v2121
    %2262 = vmatprep.subr.bf16.mxu0 %v2120
    %2263 = vmatpush1.bf16.msra.mxu0 %v2119
    %2264 = vmatprep.subr.bf16.mxu0 %v2118
    %2265 = vmatpush1.bf16.msra.mxu0 %v2117
    %2266 = vmatprep.subr.bf16.mxu0 %v2116
    %2267 = vmatpush1.bf16.msra.mxu0 %v2115
    %2268 = vmatprep.subr.bf16.mxu0 %v2146
    %2269 = vmatpush2.bf16.msra.mxu0 %v2145
    %2270 = vmatprep.subr.bf16.mxu0 %v2144
    %2271 = vmatpush2.bf16.msra.mxu0 %v2143
    %2272 = vmatprep.subr.bf16.mxu0 %v2142
    %2273 = vmatpush2.bf16.msra.mxu0 %v2141
    %2274 = vmatprep.subr.bf16.mxu0 %v2140
    %2275 = vmatpush2.bf16.msra.mxu0 %v2139
    %2276 = vmatprep.subr.bf16.mxu0 %v2138
    %2277 = vmatpush2.bf16.msra.mxu0 %v2137
    %2278 = vmatprep.subr.bf16.mxu0 %v2136
    %2279 = vmatpush2.bf16.msra.mxu0 %v2135
    %2280 = vmatprep.subr.bf16.mxu0 %v2134
    %2281 = vmatpush2.bf16.msra.mxu0 %v2133
    %2282 = vmatprep.subr.bf16.mxu0 %v2132
    %2283 = vmatpush2.bf16.msra.mxu0 %v2131
    %2284 = vmatprep.mubr.bf16.mxu0 %v1814
    %2285 = vmatmul.mubr.bf16.gmra.mxu0 %v1813
    %v2286 = vpop.f32.mrf.mxu0
    %v2287 = vadd.f32 %v2246, %v2286
    %v2288 = vpop.f32.mrf.mxu0
    %v2289 = vadd.f32 %v2248, %v2288
    %v2290 = vpop.f32.mrf.mxu0
    %v2291 = vpop.f32.mrf.mxu0
    %2292 = vdwg.mxu0
    %vm2293 = vcmp.gt.f32.partialorder %v2287, 0.0
    %vm2294 = vcmp.gt.f32.partialorder %v2289, 0.0
    %v2295 = vmul.f32 %v2287, 0.2
    %v2296 = vmul.f32 %v2289, 0.2
    %v2297 = vsel %vm2293, %v2287, %v2295
    %v2298 = vsel %vm2294, %v2289, %v2296
    %v2299 = vpack.c.bf16 %v2297, %v2297
    %v2300 = vpack.c.bf16 %v2298, %v2298
    %v2301 = vld [vmem:[#allocation7] sm:$0xf]
    %v2302 = vld [vmem:[#allocation7 + $0x4] sm:$0xf]
    %v2303 = vld [vmem:[#allocation7 + $0x8] sm:$0xf]
    %v2304 = vld [vmem:[#allocation7 + $0xc] sm:$0xf]
    %v2305 = vld [vmem:[#allocation7 + $0x10] sm:$0xf]
    %v2306 = vld [vmem:[#allocation7 + $0x14] sm:$0xf]
    %v2307 = vld [vmem:[#allocation7 + $0x18] sm:$0xf]
    %v2308 = vld [vmem:[#allocation7 + $0x1c] sm:$0xf]
    %v2309 = vld [vmem:[#allocation7 + $0x20] sm:$0xf]
    %v2310 = vld [vmem:[#allocation7 + $0x24] sm:$0xf]
    %v2311 = vld [vmem:[#allocation7 + $0x28] sm:$0xf]
    %v2312 = vld [vmem:[#allocation7 + $0x2c] sm:$0xf]
    %v2313 = vld [vmem:[#allocation7 + $0x30] sm:$0xf]
    %v2314 = vld [vmem:[#allocation7 + $0x34] sm:$0xf]
    %v2315 = vld [vmem:[#allocation7 + $0x38] sm:$0xf]
    %v2316 = vld [vmem:[#allocation7 + $0x3c] sm:$0xf]
    %v2317 = vld [vmem:[#allocation7 + $0x40] sm:$0xf]
    %v2318 = vld [vmem:[#allocation7 + $0x44] sm:$0xf]
    %v2319 = vld [vmem:[#allocation7 + $0x48] sm:$0xf]
    %v2320 = vld [vmem:[#allocation7 + $0x4c] sm:$0xf]
    %v2321 = vld [vmem:[#allocation7 + $0x50] sm:$0xf]
    %v2322 = vld [vmem:[#allocation7 + $0x54] sm:$0xf]
    %v2323 = vld [vmem:[#allocation7 + $0x58] sm:$0xf]
    %v2324 = vld [vmem:[#allocation7 + $0x5c] sm:$0xf]
    %v2325 = vld [vmem:[#allocation7 + $0x60] sm:$0xf]
    %v2326 = vld [vmem:[#allocation7 + $0x64] sm:$0xf]
    %v2327 = vld [vmem:[#allocation7 + $0x68] sm:$0xf]
    %v2328 = vld [vmem:[#allocation7 + $0x6c] sm:$0xf]
    %v2329 = vld [vmem:[#allocation7 + $0x70] sm:$0xf]
    %v2330 = vld [vmem:[#allocation7 + $0x74] sm:$0xf]
    %v2331 = vld [vmem:[#allocation7 + $0x78] sm:$0xf]
    %v2332 = vld [vmem:[#allocation7 + $0x7c] sm:$0xf]
    %v2333 = vld [vmem:[%s6] sm:$0x1]
    %v2335 = vlaneseq
    %v2336 = vshrl.u32 %v2335, 7
    %v2337 = vsub.s32 0, %v2336
    %v2338 = vrot.slane %v2333, %v2337
    %v2372 = vunpack.c.l.b16 %v2301
    %v2373 = vunpack.c.l.b16 %v2302
    %v2374 = vunpack.c.l.b16 %v2303
    %v2375 = vunpack.c.l.b16 %v2304
    %v2376 = vunpack.c.l.b16 %v2305
    %v2377 = vunpack.c.l.b16 %v2306
    %v2378 = vunpack.c.l.b16 %v2307
    %v2379 = vunpack.c.l.b16 %v2308
    %v2380 = vunpack.c.l.b16 %v2309
    %v2381 = vunpack.c.l.b16 %v2310
    %v2382 = vunpack.c.l.b16 %v2311
    %v2383 = vunpack.c.l.b16 %v2312
    %v2384 = vunpack.c.l.b16 %v2313
    %v2385 = vunpack.c.l.b16 %v2314
    %v2386 = vunpack.c.l.b16 %v2315
    %v2387 = vunpack.c.l.b16 %v2316
    %v2388 = vunpack.c.l.b16 %v2317
    %v2389 = vunpack.c.l.b16 %v2318
    %v2390 = vunpack.c.l.b16 %v2319
    %v2391 = vunpack.c.l.b16 %v2320
    %v2392 = vunpack.c.l.b16 %v2321
    %v2393 = vunpack.c.l.b16 %v2322
    %v2394 = vunpack.c.l.b16 %v2323
    %v2395 = vunpack.c.l.b16 %v2324
    %v2396 = vunpack.c.l.b16 %v2325
    %v2397 = vunpack.c.l.b16 %v2326
    %v2398 = vunpack.c.l.b16 %v2327
    %v2399 = vunpack.c.l.b16 %v2328
    %v2400 = vunpack.c.l.b16 %v2329
    %v2401 = vunpack.c.l.b16 %v2330
    %v2402 = vunpack.c.l.b16 %v2331
    %v2403 = vunpack.c.l.b16 %v2332
    %v2404 = vpack.c.b16 %v2373, %v2372
    %v2405 = vpack.c.b16 %v2375, %v2374
    %v2406 = vpack.c.b16 %v2377, %v2376
    %v2407 = vpack.c.b16 %v2379, %v2378
    %v2408 = vpack.c.b16 %v2381, %v2380
    %v2409 = vpack.c.b16 %v2383, %v2382
    %v2410 = vpack.c.b16 %v2385, %v2384
    %v2411 = vpack.c.b16 %v2387, %v2386
    %v2412 = vpack.c.b16 %v2389, %v2388
    %v2413 = vpack.c.b16 %v2391, %v2390
    %v2414 = vpack.c.b16 %v2393, %v2392
    %v2415 = vpack.c.b16 %v2395, %v2394
    %v2416 = vpack.c.b16 %v2397, %v2396
    %v2417 = vpack.c.b16 %v2399, %v2398
    %v2418 = vpack.c.b16 %v2401, %v2400
    %v2419 = vpack.c.b16 %v2403, %v2402
    %2436 = vmatprep.subr.bf16.mxu0 0
    %2437 = vmatpush1.bf16.msra.mxu0 %v2411
    %2438 = vmatprep.subr.bf16.mxu0 0
    %2439 = vmatpush1.bf16.msra.mxu0 %v2410
    %2440 = vmatprep.subr.bf16.mxu0 0
    %2441 = vmatpush1.bf16.msra.mxu0 %v2409
    %2442 = vmatprep.subr.bf16.mxu0 0
    %2443 = vmatpush1.bf16.msra.mxu0 %v2408
    %2444 = vmatprep.subr.bf16.mxu0 0
    %2445 = vmatpush1.bf16.msra.mxu0 %v2407
    %2446 = vmatprep.subr.bf16.mxu0 0
    %2447 = vmatpush1.bf16.msra.mxu0 %v2406
    %2448 = vmatprep.subr.bf16.mxu0 0
    %2449 = vmatpush1.bf16.msra.mxu0 %v2405
    %2450 = vmatprep.subr.bf16.mxu0 0
    %2451 = vmatpush1.bf16.msra.mxu0 %v2404
    %2452 = vmatprep.subr.bf16.mxu0 0
    %2453 = vmatpush2.bf16.msra.mxu0 %v2419
    %2454 = vmatprep.subr.bf16.mxu0 0
    %2455 = vmatpush2.bf16.msra.mxu0 %v2418
    %2456 = vmatprep.subr.bf16.mxu0 0
    %2457 = vmatpush2.bf16.msra.mxu0 %v2417
    %2458 = vmatprep.subr.bf16.mxu0 0
    %2459 = vmatpush2.bf16.msra.mxu0 %v2416
    %2460 = vmatprep.subr.bf16.mxu0 0
    %2461 = vmatpush2.bf16.msra.mxu0 %v2415
    %2462 = vmatprep.subr.bf16.mxu0 0
    %2463 = vmatpush2.bf16.msra.mxu0 %v2414
    %2464 = vmatprep.subr.bf16.mxu0 0
    %2465 = vmatpush2.bf16.msra.mxu0 %v2413
    %2466 = vmatprep.subr.bf16.mxu0 0
    %2467 = vmatpush2.bf16.msra.mxu0 %v2412
    %2468 = vmatprep.mubr.bf16.mxu0 %v2300
    %2469 = vmatmul.mubr.bf16.gmra.mxu0 %v2299
    %v2470 = vpop.f32.mrf.mxu0
    %v2471 = vadd.f32 %v2338, %v2470
    %v2472 = vpop.f32.mrf.mxu0
    %v2473 = vpop.f32.mrf.mxu0
    %v2474 = vpop.f32.mrf.mxu0
    %2475 = vdwg.mxu0
    %vm2476 = vcmp.gt.f32.partialorder %v2471, 0.0
    %v2477 = vmul.f32 %v2471, 0.2
    %v2478 = vsel %vm2476, %v2471, %v2477
    %v2479 = vpack.c.bf16 %v2478, %v2478
    %v2480 = vld [vmem:[%s7] sm:$0xf]
    %v2481 = vld [vmem:[%s7 + $0x4] sm:$0xf]
    %v2482 = vld [vmem:[%s7 + $0x8] sm:$0xf]
    %v2483 = vld [vmem:[%s7 + $0xc] sm:$0xf]
    %v2484 = vld [vmem:[%s7 + $0x10] sm:$0xf]
    %v2485 = vld [vmem:[%s7 + $0x14] sm:$0xf]
    %v2486 = vld [vmem:[%s7 + $0x18] sm:$0xf]
    %v2487 = vld [vmem:[%s7 + $0x1c] sm:$0xf]
    %v2488 = vld [vmem:[%s7 + $0x20] sm:$0xf]
    %v2489 = vld [vmem:[%s7 + $0x24] sm:$0xf]
    %v2490 = vld [vmem:[%s7 + $0x28] sm:$0xf]
    %v2491 = vld [vmem:[%s7 + $0x2c] sm:$0xf]
    %v2492 = vld [vmem:[%s7 + $0x30] sm:$0xf]
    %v2493 = vld [vmem:[%s7 + $0x34] sm:$0xf]
    %v2494 = vld [vmem:[%s7 + $0x38] sm:$0xf]
    %v2495 = vld [vmem:[%s7 + $0x3c] sm:$0xf]
    %v2496 = vld [vmem:[#allocation2] sm:$0x1]
    %v2498 = vlaneseq
    %v2499 = vshrl.u32 %v2498, 7
    %v2500 = vsub.s32 0, %v2499
    %v2501 = vrot.slane %v2496, %v2500
    %v2519 = vunpack.c.l.b16 %v2480
    %v2520 = vunpack.c.l.b16 %v2481
    %v2521 = vunpack.c.l.b16 %v2482
    %v2522 = vunpack.c.l.b16 %v2483
    %v2523 = vunpack.c.l.b16 %v2484
    %v2524 = vunpack.c.l.b16 %v2485
    %v2525 = vunpack.c.l.b16 %v2486
    %v2526 = vunpack.c.l.b16 %v2487
    %v2527 = vunpack.c.l.b16 %v2488
    %v2528 = vunpack.c.l.b16 %v2489
    %v2529 = vunpack.c.l.b16 %v2490
    %v2530 = vunpack.c.l.b16 %v2491
    %v2531 = vunpack.c.l.b16 %v2492
    %v2532 = vunpack.c.l.b16 %v2493
    %v2533 = vunpack.c.l.b16 %v2494
    %v2534 = vunpack.c.l.b16 %v2495
    %v2535 = vpack.c.b16 %v2520, %v2519
    %v2536 = vpack.c.b16 %v2522, %v2521
    %v2537 = vpack.c.b16 %v2524, %v2523
    %v2538 = vpack.c.b16 %v2526, %v2525
    %v2539 = vpack.c.b16 %v2528, %v2527
    %v2540 = vpack.c.b16 %v2530, %v2529
    %v2541 = vpack.c.b16 %v2532, %v2531
    %v2542 = vpack.c.b16 %v2534, %v2533
    %2551 = vmatprep.subr.bf16.mxu0 0
    %2552 = vmatpush1.bf16.msra.mxu0 %v2542
    %2553 = vmatprep.subr.bf16.mxu0 0
    %2554 = vmatpush1.bf16.msra.mxu0 %v2541
    %2555 = vmatprep.subr.bf16.mxu0 0
    %2556 = vmatpush1.bf16.msra.mxu0 %v2540
    %2557 = vmatprep.subr.bf16.mxu0 0
    %2558 = vmatpush1.bf16.msra.mxu0 %v2539
    %2559 = vmatprep.subr.bf16.mxu0 0
    %2560 = vmatpush1.bf16.msra.mxu0 %v2538
    %2561 = vmatprep.subr.bf16.mxu0 0
    %2562 = vmatpush1.bf16.msra.mxu0 %v2537
    %2563 = vmatprep.subr.bf16.mxu0 0
    %2564 = vmatpush1.bf16.msra.mxu0 %v2536
    %2565 = vmatprep.subr.bf16.mxu0 0
    %2566 = vmatpush1.bf16.msra.mxu0 %v2535
    %2567 = vmatprep.subr.bf16.mxu0 0
    %2568 = vmatpush2.bf16.msra.mxu0 0
    %2569 = vmatprep.subr.bf16.mxu0 0
    %2570 = vmatpush2.bf16.msra.mxu0 0
    %2571 = vmatprep.subr.bf16.mxu0 0
    %2572 = vmatpush2.bf16.msra.mxu0 0
    %2573 = vmatprep.subr.bf16.mxu0 0
    %2574 = vmatpush2.bf16.msra.mxu0 0
    %2575 = vmatprep.subr.bf16.mxu0 0
    %2576 = vmatpush2.bf16.msra.mxu0 0
    %2577 = vmatprep.subr.bf16.mxu0 0
    %2578 = vmatpush2.bf16.msra.mxu0 0
    %2579 = vmatprep.subr.bf16.mxu0 0
    %2580 = vmatpush2.bf16.msra.mxu0 0
    %2581 = vmatprep.subr.bf16.mxu0 0
    %2582 = vmatpush2.bf16.msra.mxu0 0
    %2583 = vmatprep.mubr.bf16.mxu0 0
    %2584 = vmatmul.mubr.bf16.gmra.mxu0 %v2479
    %v2585 = vpop.f32.mrf.mxu0
    %v2586 = vadd.f32 %v2501, %v2585
    %v2587 = vpop.f32.mrf.mxu0
    %v2588 = vpop.f32.mrf.mxu0
    %v2589 = vpop.f32.mrf.mxu0
    %2590 = vdwg.mxu0
    %v2591 = vsub.f32 0.0, %v2586
    %v2592 = vmul.f32 %v2591, 1.442695
    %v2593 = vpow.pop %v2592
    %v2594 = vadd.f32 %v2593, 1.0
    %v2595 = vrcp.pop %v2594
    %vm2596 = vcmask 7168
    %2597 = vst.msk [vmem:[%s9] sm:$0xff] %vm2596, %v2595
    // Predicated region
    $region50: #{tpu_custom_call.1} parent=1 // pred_check
      _
    $region51: #{tpu_custom_call.1} parent=1 // pred_check_branch
      %2599 = sbr.rel (0) target = $region53
    $region52: #{tpu_custom_call.1} parent=1 // pred_region
      _
    $region53: #{tpu_custom_call.1} parent=1 // pred_fallthru
      _
    // Predicated region
    $region54: #{tpu_custom_call.1} parent=1 // pred_check
      _
    $region55: #{tpu_custom_call.1} parent=1 // pred_check_branch
      %2601 = sbr.rel (0) target = $region57
    $region56: #{tpu_custom_call.1} parent=1 // pred_region
      _
    $region57: #{tpu_custom_call.1} parent=1 // pred_fallthru
      _
    %2602 = vsyncpa [#allocation4], 1
    %2603 = vsyncpa [#allocation6], 1

</llo_original>
